<compile_context>
chip_gen: v7x
topology: tpu7x:2x2x1
jax: 0.10.0
libtpu: 0.0.40
codegen_flags: <defaults>
</compile_context>

<pallas_src>
import functools

import jax
import jax.numpy as jnp
from jax import lax
from jax.experimental import pallas as pl
from jax.experimental.pallas import tpu as pltpu

_NEG_INF = -1e30  # finite "-inf": keeps (s - max) free of inf-inf NaNs on padded keys


def _round_up(x, m):
    return (x + m - 1) // m * m


def _footprint_bytes(bt, n_q, n_kv, c, c_kv, itemsize):
    """Rough VMEM footprint for one grid step with batch tile `bt`."""
    mq, mkv = bt * n_q, bt * n_kv
    act = 2 * (mq * c + mkv * c_kv + mq * c) * itemsize        # double-buffered in/out blocks
    wts = 2 * (c * c + c_kv * 2 * c + c * c + c) * itemsize    # weights (double-buffered by default)
    scr = (mq * c + mkv * 2 * c + mq * c) * itemsize           # Q / KV / ctx staging scratch
    sm = 3 * bt * n_q * n_kv * 4                               # live f32 score tiles per head
    return act + wts + scr + sm


def _pick_b_tile(B, n_q, n_kv, c, c_kv, itemsize, budget):
    divisors = [d for d in range(1, B + 1) if B % d == 0]
    fits = [d for d in divisors
            if _footprint_bytes(d, n_q, n_kv, c, c_kv, itemsize) <= budget] or [1]
    # Prefer >=2 grid steps (megacore / dual-TC sharding of the "parallel" axis).
    pool = [d for d in fits if B // d >= 2] or fits
    for d in pool:                       # smallest tile that already fills 256 MXU rows
        if d * n_q >= 256:
            return d
    return pool[-1]                      # otherwise: largest tile that fits the budget


def _device_vmem_budget():
    """(budget for b_tile sizing, scoped-VMEM limit to request) for this TPU."""
    try:
        cap = int(pltpu.get_tpu_info().vmem_capacity_bytes)   # 128 MiB v5e/v6e, 64 MiB v7x
        if cap >= (32 << 20):
            return int(cap * 0.70), int(cap * 0.85)
    except Exception:
        pass
    # Unknown part: stay inside the smallest default scoped limit (v5e: 16 MiB).
    return 12 << 20, None


def _cross_attention_kernel(xq_ref, xkv_ref, wq_ref, wkv_ref, wp_ref, bp_ref,
                            o_ref, q_buf, kv_buf, ctx_buf, *,
                            b_tile, n_q, n_kv, n_kv_valid, num_heads, head_dim):
    mq = b_tile * n_q
    c = num_heads * head_dim

    # ---- Full-width, lane-dense projections (one MXU pass each, f32 accumulate).
    # Softmax scale is folded into Wq in the wrapper; Wk|Wv are fused so the KV
    # projection contracts C_kv once for a 2C-wide output.  Results are staged in
    # VMEM scratch so per-head slices are cheap reloads, not long-lived vregs.
    q_buf[...] = jnp.dot(xq_ref[...], wq_ref[...],
                         preferred_element_type=jnp.float32).astype(q_buf.dtype)
    kv_buf[...] = jnp.dot(xkv_ref[...], wkv_ref[...],
                          preferred_element_type=jnp.float32).astype(kv_buf.dtype)

    # Key-padding mask; only materialized when the wrapper actually padded N_kv.
    masked = n_kv_valid < n_kv
    if masked:
        kv_mask = lax.broadcasted_iota(jnp.int32, (b_tile, n_q, n_kv), 2) < n_kv_valid

    # ---- Per-head attention.  `h` is a Python int: every slice/store offset is
    # static (no dynamic lane indexing).  Each iteration's only live-out is the
    # store into ctx_buf, so per-head f32 intermediates die at the store.
    for h in range(num_heads):
        lo = h * head_dim
        qh = q_buf[:, lo:lo + head_dim].reshape(b_tile, n_q, head_dim)
        kh = kv_buf[:, lo:lo + head_dim].reshape(b_tile, n_kv, head_dim)
        vh = kv_buf[:, c + lo:c + lo + head_dim].reshape(b_tile, n_kv, head_dim)

        # Scores contract over the last axis of both operands -> no K transpose.
        s = jnp.einsum('bqd,bkd->bqk', qh, kh, preferred_element_type=jnp.float32)
        if masked:
            s = jnp.where(kv_mask, s, _NEG_INF)

        s = s - jnp.max(s, axis=-1, keepdims=True)
        p = jnp.exp(s)
        l = jnp.sum(p, axis=-1, keepdims=True)
        inv = pl.reciprocal(l, approx=True)          # EUP slot
        inv = inv * (2.0 - l * inv)                  # one Newton step -> ~f32 exact

        o3 = jnp.einsum('bqk,bkd->bqd', p.astype(vh.dtype), vh,
                        preferred_element_type=jnp.float32) * inv
        ctx_buf[:, lo:lo + head_dim] = o3.reshape(mq, head_dim).astype(ctx_buf.dtype)

    # ---- Single full-width output projection (K = C, not head_dim) + bias.
    out = jnp.dot(ctx_buf[...], wp_ref[...], preferred_element_type=jnp.float32)
    o_ref[...] = (out + bp_ref[...]).astype(o_ref.dtype)


def cross_attention(x_q, x_kv, params, *, num_heads, b_tile=None,
                    compute_dtype=None, vmem_limit_bytes=None):
    """Pallas-TPU CrossAttention forward (eval semantics: dropout = identity).

    params = (wq, wk, wv, wp, bp) with Linear weights stored [in, out]
    (y = x @ W, i.e. PyTorch's x @ W.T).  qkv_bias=False -> no q/k/v biases.
    Pass compute_dtype=jnp.bfloat16 on v6e/v7x for MXU peak (f32 accumulation
    and f32 softmax math are kept regardless).
    """
    wq, wk, wv, wp, bp = params
    B, n_q0, C = x_q.shape
    Bk, n_kv0, C_kv = x_kv.shape
    assert B == Bk, "batch mismatch"
    assert C % num_heads == 0, "dim must be divisible by num_heads"
    head_dim = C // num_heads
    scale = float(head_dim) ** (-0.5)

    out_dtype = x_q.dtype
    compute_dtype = jnp.dtype(x_q.dtype if compute_dtype is None else compute_dtype)

    # ---- Pad sequence dims to TPU-friendly sizes (sublane=8; lane=128 when long).
    n_q = _round_up(n_q0, 8)
    n_kv = _round_up(n_kv0, 128 if n_kv0 >= 128 else 8)
    if n_q != n_q0:
        x_q = jnp.pad(x_q, ((0, 0), (0, n_q - n_q0), (0, 0)))
    if n_kv != n_kv0:
        x_kv = jnp.pad(x_kv, ((0, 0), (0, n_kv - n_kv0), (0, 0)))

    # ---- Per-generation VMEM budget -> batch tile + scoped-VMEM limit.
    if vmem_limit_bytes is not None:
        budget, auto_limit = int(vmem_limit_bytes * 0.9), vmem_limit_bytes
    else:
        budget, auto_limit = _device_vmem_budget()
    if b_tile is None:
        b_tile = _pick_b_tile(B, n_q, n_kv, C, C_kv, compute_dtype.itemsize, budget)
    assert B % b_tile == 0, "B must be divisible by b_tile"
    est = _footprint_bytes(b_tile, n_q, n_kv, C, C_kv, compute_dtype.itemsize)
    if vmem_limit_bytes is not None:
        vmem_limit = vmem_limit_bytes
    elif est <= (14 << 20):
        vmem_limit = None          # fits every generation's default scoped VMEM
    else:
        vmem_limit = auto_limit

    mq, mkv = b_tile * n_q, b_tile * n_kv

    # ---- Weight prep: fold scale into Wq, fuse Wk|Wv, keep everything lane-dense.
    f32 = jnp.float32
    wq_s = (wq.astype(f32) * scale).astype(compute_dtype)            # [C, C]
    wkv = jnp.concatenate([wk, wv], axis=1).astype(compute_dtype)    # [C_kv, 2C]
    wp_c = wp.astype(compute_dtype)                                  # [C, C]
    bp2 = bp.reshape(1, C).astype(f32)

    # ---- Fold batch into the matmul M dimension (free leading-dim reshapes).
    xq2 = x_q.reshape(B * n_q, C).astype(compute_dtype)
    xkv2 = x_kv.reshape(B * n_kv, C_kv).astype(compute_dtype)

    kernel = functools.partial(
        _cross_attention_kernel, b_tile=b_tile, n_q=n_q, n_kv=n_kv,
        n_kv_valid=n_kv0, num_heads=num_heads, head_dim=head_dim)

    out2 = pl.pallas_call(
        kernel,
        out_shape=jax.ShapeDtypeStruct((B * n_q, C), out_dtype),
        grid_spec=pltpu.PrefetchScalarGridSpec(
            num_scalar_prefetch=0,
            grid=(B // b_tile,),
            in_specs=[
                pl.BlockSpec((mq, C), lambda b: (b, 0)),
                pl.BlockSpec((mkv, C_kv), lambda b: (b, 0)),
                # Constant-index weights/bias: DMA'd once, resident across steps.
                # (Could be single-buffered via pipeline_mode=pl.Buffered(1) on JAX
                # versions that support it; omitted here for portability.)
                pl.BlockSpec((C, C), lambda b: (0, 0)),
                pl.BlockSpec((C_kv, 2 * C), lambda b: (0, 0)),
                pl.BlockSpec((C, C), lambda b: (0, 0)),
                pl.BlockSpec((1, C), lambda b: (0, 0)),
            ],
            out_specs=pl.BlockSpec((mq, C), lambda b: (b, 0)),
            scratch_shapes=[
                pltpu.VMEM((mq, C), compute_dtype),        # Q staging
                pltpu.VMEM((mkv, 2 * C), compute_dtype),   # K|V staging
                pltpu.VMEM((mq, C), compute_dtype),        # per-head context -> proj input
            ],
        ),
        compiler_params=pltpu.CompilerParams(
            dimension_semantics=("parallel",),
            vmem_limit_bytes=vmem_limit),
    )(xq2, xkv2, wq_s, wkv, wp_c, bp2)

    out = out2.reshape(B, n_q, C)
    if n_q != n_q0:
        out = out[:, :n_q0, :]
    return out


def cross_attention_reference(x_q, x_kv, params, *, num_heads):
    """Plain-JAX reference mirroring the PyTorch forward."""
    wq, wk, wv, wp, bp = params
    B, N_q, C = x_q.shape
    _, N_kv, _ = x_kv.shape
    head_dim = C // num_heads
    scale = float(head_dim) ** (-0.5)

    q = (x_q @ wq).reshape(B, N_q, num_heads, head_dim)
    k = (x_kv @ wk).reshape(B, N_kv, num_heads, head_dim)
    v = (x_kv @ wv).reshape(B, N_kv, num_heads, head_dim)

    s = jnp.einsum('bqhd,bkhd->bhqk', q, k) * scale
    p = jax.nn.softmax(s, axis=-1)
    o = jnp.einsum('bhqk,bkhd->bqhd', p, v).reshape(B, N_q, C)
    return o @ wp + bp


if __name__ == "__main__":
    # Small shapes consistent with the module; deliberately NOT 8/128 aligned so the
    # wrapper's padding + in-kernel key-masking path is exercised and verified.
    B, N_q, N_kv = 4, 7, 12
    dim, kv_dim = 32, 48
    num_heads = 4            # head_dim = 8

    key = jax.random.PRNGKey(0)
    k0, k1, k2, k3, k4, k5, k6 = jax.random.split(key, 7)

    x_q = jax.random.normal(k0, (B, N_q, dim), dtype=jnp.float32)
    x_kv = jax.random.normal(k1, (B, N_kv, kv_dim), dtype=jnp.float32)

    # Linear weights stored [in, out]; qkv_bias=False (module default), proj has bias.
    wq = jax.random.normal(k2, (dim, dim), dtype=jnp.float32) * (dim ** -0.5)
    wk = jax.random.normal(k3, (kv_dim, dim), dtype=jnp.float32) * (kv_dim ** -0.5)
    wv = jax.random.normal(k4, (kv_dim, dim), dtype=jnp.float32) * (kv_dim ** -0.5)
    wp = jax.random.normal(k5, (dim, dim), dtype=jnp.float32) * (dim ** -0.5)
    bp = jax.random.normal(k6, (dim,), dtype=jnp.float32) * 0.01
    params = (wq, wk, wv, wp, bp)

    ref = cross_attention_reference(x_q, x_kv, params, num_heads=num_heads)

    # f32 operands: tight parity check against the plain-JAX reference.
    out = jax.block_until_ready(
        cross_attention(x_q, x_kv, params, num_heads=num_heads))
    assert out.shape == (B, N_q, dim)
    assert jnp.allclose(out, ref, atol=1e-4, rtol=1e-4), "f32 mismatch vs reference"

    # bf16 operands / f32 accumulation (v6e/v7x MXU fast path) at loose tolerance.
    out_bf16 = jax.block_until_ready(
        cross_attention(x_q, x_kv, params, num_heads=num_heads,
                        compute_dtype=jnp.bfloat16))
    assert float(jnp.max(jnp.abs(out_bf16 - ref))) < 0.25, "bf16 path diverged"

    print("KERNEL_OK")
</pallas_src>

<mosaic_0001>
module attributes {stable_mosaic.version = 11 : i64} {
  func.func @_cross_attention_kernel(%arg0: i32, %arg1: memref<16x32xf32, #tpu.memory_space<vmem>>, %arg2: memref<32x48xf32, #tpu.memory_space<vmem>>, %arg3: memref<32x32xf32, #tpu.memory_space<vmem>>, %arg4: memref<48x64xf32, #tpu.memory_space<vmem>>, %arg5: memref<32x32xf32, #tpu.memory_space<vmem>>, %arg6: memref<1x32xf32, #tpu.memory_space<vmem>>, %arg7: memref<16x32xf32, #tpu.memory_space<vmem>>, %arg8: memref<16x32xf32, #tpu.memory_space<vmem>>, %arg9: memref<32x64xf32, #tpu.memory_space<vmem>>, %arg10: memref<16x32xf32, #tpu.memory_space<vmem>>) attributes {dimension_semantics = [#tpu.dimension_semantics<parallel>], iteration_bounds = array<i64: 2>, scalar_prefetch = 0 : i64, scratch_operands = 3 : i64, tpu.core_type = #tpu.core_type<tc>, window_params = [{transform_indices = @transform_0, window_bounds = array<i64: 16, 32>}, {transform_indices = @transform_1, window_bounds = array<i64: 32, 48>}, {pipeline_mode = #tpu.pipeline_mode<synchronous>, transform_indices = @transform_2, window_bounds = array<i64: 32, 32>}, {pipeline_mode = #tpu.pipeline_mode<synchronous>, transform_indices = @transform_3, window_bounds = array<i64: 48, 64>}, {pipeline_mode = #tpu.pipeline_mode<synchronous>, transform_indices = @transform_4, window_bounds = array<i64: 32, 32>}, {pipeline_mode = #tpu.pipeline_mode<synchronous>, transform_indices = @transform_5, window_bounds = array<i64: 1, 32>}, {transform_indices = @transform_6, window_bounds = array<i64: 16, 32>}]} {
    %c0 = arith.constant 0 : index
    %c0_0 = arith.constant 0 : index
    %0 = vector.load %arg1[%c0, %c0_0] : memref<16x32xf32, #tpu.memory_space<vmem>>, vector<16x32xf32>
    %c0_1 = arith.constant 0 : index
    %c0_2 = arith.constant 0 : index
    %1 = vector.load %arg3[%c0_1, %c0_2] : memref<32x32xf32, #tpu.memory_space<vmem>>, vector<32x32xf32>
    %cst = arith.constant dense<0.000000e+00> : vector<16x32xf32>
    %2 = tpu.matmul %0, %1, %cst {dimension_numbers = #tpu.dot_dimension_numbers<[1], [0], [0], [1], [0, 0, 1, 1], [], []>} : vector<16x32xf32>, vector<32x32xf32>, vector<16x32xf32> -> vector<16x32xf32>
    %c0_3 = arith.constant 0 : index
    %c0_4 = arith.constant 0 : index
    %3 = vector.load %arg8[%c0_3, %c0_4] : memref<16x32xf32, #tpu.memory_space<vmem>>, vector<16x32xf32>
    tpu.vector_store %arg8[%c0_3, %c0_4], %2 {strides = array<i32>} : memref<16x32xf32, #tpu.memory_space<vmem>>, vector<16x32xf32>,
    %c0_5 = arith.constant 0 : index
    %c0_6 = arith.constant 0 : index
    %4 = vector.load %arg2[%c0_5, %c0_6] : memref<32x48xf32, #tpu.memory_space<vmem>>, vector<32x48xf32>
    %c0_7 = arith.constant 0 : index
    %c0_8 = arith.constant 0 : index
    %5 = vector.load %arg4[%c0_7, %c0_8] : memref<48x64xf32, #tpu.memory_space<vmem>>, vector<48x64xf32>
    %cst_9 = arith.constant dense<0.000000e+00> : vector<32x64xf32>
    %6 = tpu.matmul %4, %5, %cst_9 {dimension_numbers = #tpu.dot_dimension_numbers<[1], [0], [0], [1], [0, 0, 1, 1], [], []>} : vector<32x48xf32>, vector<48x64xf32>, vector<32x64xf32> -> vector<32x64xf32>
    %c0_10 = arith.constant 0 : index
    %c0_11 = arith.constant 0 : index
    %7 = vector.load %arg9[%c0_10, %c0_11] : memref<32x64xf32, #tpu.memory_space<vmem>>, vector<32x64xf32>
    tpu.vector_store %arg9[%c0_10, %c0_11], %6 {strides = array<i32>} : memref<32x64xf32, #tpu.memory_space<vmem>>, vector<32x64xf32>,
    %8 = tpu.iota {dimensions = array<i32: 2>} : vector<2x8x16xi32>
    %c12_i32 = arith.constant 12 : i32
    %9 = vector.broadcast %c12_i32 : i32 to vector<2x8x16xi32>
    %10 = arith.cmpi slt, %8, %9 : vector<2x8x16xi32>
    %c0_12 = arith.constant 0 : index
    %c0_13 = arith.constant 0 : index
    %11 = vector.load %arg8[%c0_12, %c0_13] : memref<16x32xf32, #tpu.memory_space<vmem>>, vector<16x8xf32>
    %12 = vector.shape_cast %11 : vector<16x8xf32> to vector<2x8x8xf32>
    %c0_14 = arith.constant 0 : index
    %c0_15 = arith.constant 0 : index
    %13 = vector.load %arg9[%c0_14, %c0_15] : memref<32x64xf32, #tpu.memory_space<vmem>>, vector<32x8xf32>
    %14 = vector.shape_cast %13 : vector<32x8xf32> to vector<2x16x8xf32>
    %c0_16 = arith.constant 0 : index
    %c32 = arith.constant 32 : index
    %15 = vector.load %arg9[%c0_16, %c32] : memref<32x64xf32, #tpu.memory_space<vmem>>, vector<32x8xf32>
    %16 = vector.shape_cast %15 : vector<32x8xf32> to vector<2x16x8xf32>
    "tpu.trace_start"() <{level = 10 : i32, message = "bqd,bkd->bqk"}> : () -> ()
    %cst_17 = arith.constant dense<0.000000e+00> : vector<2x8x16xf32>
    %17 = tpu.matmul %12, %14, %cst_17 {dimension_numbers = #tpu.dot_dimension_numbers<[2], [2], [1], [1], [0, 0, 0, 1, 1, 1], [0], [0]>} : vector<2x8x8xf32>, vector<2x16x8xf32>, vector<2x8x16xf32> -> vector<2x8x16xf32>
    %cst_18 = arith.constant -1.000000e+30 : f32
    "tpu.trace_stop"() : () -> ()
    %18 = vector.broadcast %cst_18 : f32 to vector<2x8x16xf32>
    %19 = arith.select %10, %17, %18 : vector<2x8x16xi1>, vector<2x8x16xf32>
    %cst_19 = arith.constant dense<0xFF800000> : vector<2x8xf32>
    %20 = vector.multi_reduction <maximumf>, %19, %cst_19 [2] : vector<2x8x16xf32> to vector<2x8xf32>
    %21 = vector.shape_cast %20 : vector<2x8xf32> to vector<2x8x1xf32>
    %22 = vector.broadcast %21 : vector<2x8x1xf32> to vector<2x8x16xf32>
    %23 = arith.subf %19, %22 : vector<2x8x16xf32>
    %24 = math.exp %23 : vector<2x8x16xf32>
    %cst_20 = arith.constant dense<0.000000e+00> : vector<2x8xf32>
    %25 = vector.multi_reduction <add>, %24, %cst_20 [2] : vector<2x8x16xf32> to vector<2x8xf32>
    %26 = vector.shape_cast %25 : vector<2x8xf32> to vector<2x8x1xf32>
    %27 = tpu.reciprocal %26 {approx = true} : vector<2x8x1xf32> -> vector<2x8x1xf32>
    %28 = arith.mulf %26, %27 : vector<2x8x1xf32>
    %cst_21 = arith.constant 2.000000e+00 : f32
    %29 = vector.broadcast %cst_21 : f32 to vector<2x8x1xf32>
    %30 = arith.subf %29, %28 : vector<2x8x1xf32>
    %31 = arith.mulf %27, %30 : vector<2x8x1xf32>
    "tpu.trace_start"() <{level = 10 : i32, message = "bqk,bkd->bqd"}> : () -> ()
    %cst_22 = arith.constant dense<0.000000e+00> : vector<2x8x8xf32>
    %32 = tpu.matmul %24, %16, %cst_22 {dimension_numbers = #tpu.dot_dimension_numbers<[2], [1], [1], [2], [0, 0, 0, 1, 1, 2], [0], [0]>} : vector<2x8x16xf32>, vector<2x16x8xf32>, vector<2x8x8xf32> -> vector<2x8x8xf32>
    "tpu.trace_stop"() : () -> ()
    %33 = vector.broadcast %31 : vector<2x8x1xf32> to vector<2x8x8xf32>
    %34 = arith.mulf %32, %33 : vector<2x8x8xf32>
    %35 = vector.shape_cast %34 : vector<2x8x8xf32> to vector<16x8xf32>
    %c0_23 = arith.constant 0 : index
    %c0_24 = arith.constant 0 : index
    %36 = vector.load %arg10[%c0_23, %c0_24] : memref<16x32xf32, #tpu.memory_space<vmem>>, vector<16x8xf32>
    tpu.vector_store %arg10[%c0_23, %c0_24], %35 {strides = array<i32>} : memref<16x32xf32, #tpu.memory_space<vmem>>, vector<16x8xf32>,
    %c0_25 = arith.constant 0 : index
    %c8 = arith.constant 8 : index
    %37 = vector.load %arg8[%c0_25, %c8] : memref<16x32xf32, #tpu.memory_space<vmem>>, vector<16x8xf32>
    %38 = vector.shape_cast %37 : vector<16x8xf32> to vector<2x8x8xf32>
    %c0_26 = arith.constant 0 : index
    %c8_27 = arith.constant 8 : index
    %39 = vector.load %arg9[%c0_26, %c8_27] : memref<32x64xf32, #tpu.memory_space<vmem>>, vector<32x8xf32>
    %40 = vector.shape_cast %39 : vector<32x8xf32> to vector<2x16x8xf32>
    %c0_28 = arith.constant 0 : index
    %c40 = arith.constant 40 : index
    %41 = vector.load %arg9[%c0_28, %c40] : memref<32x64xf32, #tpu.memory_space<vmem>>, vector<32x8xf32>
    %42 = vector.shape_cast %41 : vector<32x8xf32> to vector<2x16x8xf32>
    "tpu.trace_start"() <{level = 10 : i32, message = "bqd,bkd->bqk"}> : () -> ()
    %cst_29 = arith.constant dense<0.000000e+00> : vector<2x8x16xf32>
    %43 = tpu.matmul %38, %40, %cst_29 {dimension_numbers = #tpu.dot_dimension_numbers<[2], [2], [1], [1], [0, 0, 0, 1, 1, 1], [0], [0]>} : vector<2x8x8xf32>, vector<2x16x8xf32>, vector<2x8x16xf32> -> vector<2x8x16xf32>
    %cst_30 = arith.constant -1.000000e+30 : f32
    "tpu.trace_stop"() : () -> ()
    %44 = vector.broadcast %cst_30 : f32 to vector<2x8x16xf32>
    %45 = arith.select %10, %43, %44 : vector<2x8x16xi1>, vector<2x8x16xf32>
    %cst_31 = arith.constant dense<0xFF800000> : vector<2x8xf32>
    %46 = vector.multi_reduction <maximumf>, %45, %cst_31 [2] : vector<2x8x16xf32> to vector<2x8xf32>
    %47 = vector.shape_cast %46 : vector<2x8xf32> to vector<2x8x1xf32>
    %48 = vector.broadcast %47 : vector<2x8x1xf32> to vector<2x8x16xf32>
    %49 = arith.subf %45, %48 : vector<2x8x16xf32>
    %50 = math.exp %49 : vector<2x8x16xf32>
    %cst_32 = arith.constant dense<0.000000e+00> : vector<2x8xf32>
    %51 = vector.multi_reduction <add>, %50, %cst_32 [2] : vector<2x8x16xf32> to vector<2x8xf32>
    %52 = vector.shape_cast %51 : vector<2x8xf32> to vector<2x8x1xf32>
    %53 = tpu.reciprocal %52 {approx = true} : vector<2x8x1xf32> -> vector<2x8x1xf32>
    %54 = arith.mulf %52, %53 : vector<2x8x1xf32>
    %cst_33 = arith.constant 2.000000e+00 : f32
    %55 = vector.broadcast %cst_33 : f32 to vector<2x8x1xf32>
    %56 = arith.subf %55, %54 : vector<2x8x1xf32>
    %57 = arith.mulf %53, %56 : vector<2x8x1xf32>
    "tpu.trace_start"() <{level = 10 : i32, message = "bqk,bkd->bqd"}> : () -> ()
    %cst_34 = arith.constant dense<0.000000e+00> : vector<2x8x8xf32>
    %58 = tpu.matmul %50, %42, %cst_34 {dimension_numbers = #tpu.dot_dimension_numbers<[2], [1], [1], [2], [0, 0, 0, 1, 1, 2], [0], [0]>} : vector<2x8x16xf32>, vector<2x16x8xf32>, vector<2x8x8xf32> -> vector<2x8x8xf32>
    "tpu.trace_stop"() : () -> ()
    %59 = vector.broadcast %57 : vector<2x8x1xf32> to vector<2x8x8xf32>
    %60 = arith.mulf %58, %59 : vector<2x8x8xf32>
    %61 = vector.shape_cast %60 : vector<2x8x8xf32> to vector<16x8xf32>
    %c0_35 = arith.constant 0 : index
    %c8_36 = arith.constant 8 : index
    %62 = vector.load %arg10[%c0_35, %c8_36] : memref<16x32xf32, #tpu.memory_space<vmem>>, vector<16x8xf32>
    tpu.vector_store %arg10[%c0_35, %c8_36], %61 {strides = array<i32>} : memref<16x32xf32, #tpu.memory_space<vmem>>, vector<16x8xf32>,
    %c0_37 = arith.constant 0 : index
    %c16 = arith.constant 16 : index
    %63 = vector.load %arg8[%c0_37, %c16] : memref<16x32xf32, #tpu.memory_space<vmem>>, vector<16x8xf32>
    %64 = vector.shape_cast %63 : vector<16x8xf32> to vector<2x8x8xf32>
    %c0_38 = arith.constant 0 : index
    %c16_39 = arith.constant 16 : index
    %65 = vector.load %arg9[%c0_38, %c16_39] : memref<32x64xf32, #tpu.memory_space<vmem>>, vector<32x8xf32>
    %66 = vector.shape_cast %65 : vector<32x8xf32> to vector<2x16x8xf32>
    %c0_40 = arith.constant 0 : index
    %c48 = arith.constant 48 : index
    %67 = vector.load %arg9[%c0_40, %c48] : memref<32x64xf32, #tpu.memory_space<vmem>>, vector<32x8xf32>
    %68 = vector.shape_cast %67 : vector<32x8xf32> to vector<2x16x8xf32>
    "tpu.trace_start"() <{level = 10 : i32, message = "bqd,bkd->bqk"}> : () -> ()
    %cst_41 = arith.constant dense<0.000000e+00> : vector<2x8x16xf32>
    %69 = tpu.matmul %64, %66, %cst_41 {dimension_numbers = #tpu.dot_dimension_numbers<[2], [2], [1], [1], [0, 0, 0, 1, 1, 1], [0], [0]>} : vector<2x8x8xf32>, vector<2x16x8xf32>, vector<2x8x16xf32> -> vector<2x8x16xf32>
    %cst_42 = arith.constant -1.000000e+30 : f32
    "tpu.trace_stop"() : () -> ()
    %70 = vector.broadcast %cst_42 : f32 to vector<2x8x16xf32>
    %71 = arith.select %10, %69, %70 : vector<2x8x16xi1>, vector<2x8x16xf32>
    %cst_43 = arith.constant dense<0xFF800000> : vector<2x8xf32>
    %72 = vector.multi_reduction <maximumf>, %71, %cst_43 [2] : vector<2x8x16xf32> to vector<2x8xf32>
    %73 = vector.shape_cast %72 : vector<2x8xf32> to vector<2x8x1xf32>
    %74 = vector.broadcast %73 : vector<2x8x1xf32> to vector<2x8x16xf32>
    %75 = arith.subf %71, %74 : vector<2x8x16xf32>
    %76 = math.exp %75 : vector<2x8x16xf32>
    %cst_44 = arith.constant dense<0.000000e+00> : vector<2x8xf32>
    %77 = vector.multi_reduction <add>, %76, %cst_44 [2] : vector<2x8x16xf32> to vector<2x8xf32>
    %78 = vector.shape_cast %77 : vector<2x8xf32> to vector<2x8x1xf32>
    %79 = tpu.reciprocal %78 {approx = true} : vector<2x8x1xf32> -> vector<2x8x1xf32>
    %80 = arith.mulf %78, %79 : vector<2x8x1xf32>
    %cst_45 = arith.constant 2.000000e+00 : f32
    %81 = vector.broadcast %cst_45 : f32 to vector<2x8x1xf32>
    %82 = arith.subf %81, %80 : vector<2x8x1xf32>
    %83 = arith.mulf %79, %82 : vector<2x8x1xf32>
    "tpu.trace_start"() <{level = 10 : i32, message = "bqk,bkd->bqd"}> : () -> ()
    %cst_46 = arith.constant dense<0.000000e+00> : vector<2x8x8xf32>
    %84 = tpu.matmul %76, %68, %cst_46 {dimension_numbers = #tpu.dot_dimension_numbers<[2], [1], [1], [2], [0, 0, 0, 1, 1, 2], [0], [0]>} : vector<2x8x16xf32>, vector<2x16x8xf32>, vector<2x8x8xf32> -> vector<2x8x8xf32>
    "tpu.trace_stop"() : () -> ()
    %85 = vector.broadcast %83 : vector<2x8x1xf32> to vector<2x8x8xf32>
    %86 = arith.mulf %84, %85 : vector<2x8x8xf32>
    %87 = vector.shape_cast %86 : vector<2x8x8xf32> to vector<16x8xf32>
    %c0_47 = arith.constant 0 : index
    %c16_48 = arith.constant 16 : index
    %88 = vector.load %arg10[%c0_47, %c16_48] : memref<16x32xf32, #tpu.memory_space<vmem>>, vector<16x8xf32>
    tpu.vector_store %arg10[%c0_47, %c16_48], %87 {strides = array<i32>} : memref<16x32xf32, #tpu.memory_space<vmem>>, vector<16x8xf32>,
    %c0_49 = arith.constant 0 : index
    %c24 = arith.constant 24 : index
    %89 = vector.load %arg8[%c0_49, %c24] : memref<16x32xf32, #tpu.memory_space<vmem>>, vector<16x8xf32>
    %90 = vector.shape_cast %89 : vector<16x8xf32> to vector<2x8x8xf32>
    %c0_50 = arith.constant 0 : index
    %c24_51 = arith.constant 24 : index
    %91 = vector.load %arg9[%c0_50, %c24_51] : memref<32x64xf32, #tpu.memory_space<vmem>>, vector<32x8xf32>
    %92 = vector.shape_cast %91 : vector<32x8xf32> to vector<2x16x8xf32>
    %c0_52 = arith.constant 0 : index
    %c56 = arith.constant 56 : index
    %93 = vector.load %arg9[%c0_52, %c56] : memref<32x64xf32, #tpu.memory_space<vmem>>, vector<32x8xf32>
    %94 = vector.shape_cast %93 : vector<32x8xf32> to vector<2x16x8xf32>
    "tpu.trace_start"() <{level = 10 : i32, message = "bqd,bkd->bqk"}> : () -> ()
    %cst_53 = arith.constant dense<0.000000e+00> : vector<2x8x16xf32>
    %95 = tpu.matmul %90, %92, %cst_53 {dimension_numbers = #tpu.dot_dimension_numbers<[2], [2], [1], [1], [0, 0, 0, 1, 1, 1], [0], [0]>} : vector<2x8x8xf32>, vector<2x16x8xf32>, vector<2x8x16xf32> -> vector<2x8x16xf32>
    %cst_54 = arith.constant -1.000000e+30 : f32
    "tpu.trace_stop"() : () -> ()
    %96 = vector.broadcast %cst_54 : f32 to vector<2x8x16xf32>
    %97 = arith.select %10, %95, %96 : vector<2x8x16xi1>, vector<2x8x16xf32>
    %cst_55 = arith.constant dense<0xFF800000> : vector<2x8xf32>
    %98 = vector.multi_reduction <maximumf>, %97, %cst_55 [2] : vector<2x8x16xf32> to vector<2x8xf32>
    %99 = vector.shape_cast %98 : vector<2x8xf32> to vector<2x8x1xf32>
    %100 = vector.broadcast %99 : vector<2x8x1xf32> to vector<2x8x16xf32>
    %101 = arith.subf %97, %100 : vector<2x8x16xf32>
    %102 = math.exp %101 : vector<2x8x16xf32>
    %cst_56 = arith.constant dense<0.000000e+00> : vector<2x8xf32>
    %103 = vector.multi_reduction <add>, %102, %cst_56 [2] : vector<2x8x16xf32> to vector<2x8xf32>
    %104 = vector.shape_cast %103 : vector<2x8xf32> to vector<2x8x1xf32>
    %105 = tpu.reciprocal %104 {approx = true} : vector<2x8x1xf32> -> vector<2x8x1xf32>
    %106 = arith.mulf %104, %105 : vector<2x8x1xf32>
    %cst_57 = arith.constant 2.000000e+00 : f32
    %107 = vector.broadcast %cst_57 : f32 to vector<2x8x1xf32>
    %108 = arith.subf %107, %106 : vector<2x8x1xf32>
    %109 = arith.mulf %105, %108 : vector<2x8x1xf32>
    "tpu.trace_start"() <{level = 10 : i32, message = "bqk,bkd->bqd"}> : () -> ()
    %cst_58 = arith.constant dense<0.000000e+00> : vector<2x8x8xf32>
    %110 = tpu.matmul %102, %94, %cst_58 {dimension_numbers = #tpu.dot_dimension_numbers<[2], [1], [1], [2], [0, 0, 0, 1, 1, 2], [0], [0]>} : vector<2x8x16xf32>, vector<2x16x8xf32>, vector<2x8x8xf32> -> vector<2x8x8xf32>
    "tpu.trace_stop"() : () -> ()
    %111 = vector.broadcast %109 : vector<2x8x1xf32> to vector<2x8x8xf32>
    %112 = arith.mulf %110, %111 : vector<2x8x8xf32>
    %113 = vector.shape_cast %112 : vector<2x8x8xf32> to vector<16x8xf32>
    %c0_59 = arith.constant 0 : index
    %c24_60 = arith.constant 24 : index
    %114 = vector.load %arg10[%c0_59, %c24_60] : memref<16x32xf32, #tpu.memory_space<vmem>>, vector<16x8xf32>
    tpu.vector_store %arg10[%c0_59, %c24_60], %113 {strides = array<i32>} : memref<16x32xf32, #tpu.memory_space<vmem>>, vector<16x8xf32>,
    %c0_61 = arith.constant 0 : index
    %c0_62 = arith.constant 0 : index
    %115 = vector.load %arg10[%c0_61, %c0_62] : memref<16x32xf32, #tpu.memory_space<vmem>>, vector<16x32xf32>
    %c0_63 = arith.constant 0 : index
    %c0_64 = arith.constant 0 : index
    %116 = vector.load %arg5[%c0_63, %c0_64] : memref<32x32xf32, #tpu.memory_space<vmem>>, vector<32x32xf32>
    %cst_65 = arith.constant dense<0.000000e+00> : vector<16x32xf32>
    %117 = tpu.matmul %115, %116, %cst_65 {dimension_numbers = #tpu.dot_dimension_numbers<[1], [0], [0], [1], [0, 0, 1, 1], [], []>} : vector<16x32xf32>, vector<32x32xf32>, vector<16x32xf32> -> vector<16x32xf32>
    %c0_66 = arith.constant 0 : index
    %c0_67 = arith.constant 0 : index
    %118 = vector.load %arg6[%c0_66, %c0_67] : memref<1x32xf32, #tpu.memory_space<vmem>>, vector<1x32xf32>
    %119 = vector.broadcast %118 : vector<1x32xf32> to vector<16x32xf32>
    %120 = arith.addf %117, %119 : vector<16x32xf32>
    %c0_68 = arith.constant 0 : index
    %c0_69 = arith.constant 0 : index
    %121 = vector.load %arg7[%c0_68, %c0_69] : memref<16x32xf32, #tpu.memory_space<vmem>>, vector<16x32xf32>
    tpu.vector_store %arg7[%c0_68, %c0_69], %120 {strides = array<i32>} : memref<16x32xf32, #tpu.memory_space<vmem>>, vector<16x32xf32>,
    return
  }
  func.func @transform_0(%arg0: i32) -> (i32, i32) {
    %c0_i32 = arith.constant 0 : i32
    %c0_i32_0 = arith.constant 0 : i32
    return %arg0, %c0_i32 : i32, i32
  }
  func.func @transform_1(%arg0: i32) -> (i32, i32) {
    %c0_i32 = arith.constant 0 : i32
    %c0_i32_0 = arith.constant 0 : i32
    return %arg0, %c0_i32 : i32, i32
  }
  func.func @transform_2(%arg0: i32) -> (i32, i32) {
    %c0_i32 = arith.constant 0 : i32
    %c0_i32_0 = arith.constant 0 : i32
    %c0_i32_1 = arith.constant 0 : i32
    return %c0_i32, %c0_i32_0 : i32, i32
  }
  func.func @transform_3(%arg0: i32) -> (i32, i32) {
    %c0_i32 = arith.constant 0 : i32
    %c0_i32_0 = arith.constant 0 : i32
    %c0_i32_1 = arith.constant 0 : i32
    return %c0_i32, %c0_i32_0 : i32, i32
  }
  func.func @transform_4(%arg0: i32) -> (i32, i32) {
    %c0_i32 = arith.constant 0 : i32
    %c0_i32_0 = arith.constant 0 : i32
    %c0_i32_1 = arith.constant 0 : i32
    return %c0_i32, %c0_i32_0 : i32, i32
  }
  func.func @transform_5(%arg0: i32) -> (i32, i32) {
    %c0_i32 = arith.constant 0 : i32
    %c0_i32_0 = arith.constant 0 : i32
    %c0_i32_1 = arith.constant 0 : i32
    return %c0_i32, %c0_i32_0 : i32, i32
  }
  func.func @transform_6(%arg0: i32) -> (i32, i32) {
    %c0_i32 = arith.constant 0 : i32
    %c0_i32_0 = arith.constant 0 : i32
    return %arg0, %c0_i32 : i32, i32
  }
}

</mosaic_0001>

<llo_original>
// kernel: tpu_custom_call.1
$region0: #{tpu_custom_call.1}
  #allocation0 [shape = 'u32[]', space=smem, size = 0x4, offset = 0x4, fixed_abs, tag = 'smem constant byte address 0x4 - core index']
  #allocation1 [shape = 'u32[144,128]{1,0:T(1,128)}', space=vmem, size = 0x12000, scoped, tag = 'internal scratch']
  #allocation2 [shape = 'f32[16,32]{1,0:T(8,128)}', space=vmem, size = 0x2000, scoped, tag = 'scratch operand']
  #allocation3 [shape = 'f32[32,64]{1,0:T(8,128)}', space=vmem, size = 0x4000, scoped, tag = 'scratch operand']
  #allocation4 [shape = 'f32[16,32]{1,0:T(8,128)}', space=vmem, size = 0x2000, scoped, tag = 'scratch operand']
  %s0 = inlined_call_operand.vmem [shape: f32[32,32], index: 0, kind: input, shape index: {}]
  %s1 = inlined_call_operand.vmem [shape: f32[64,48], index: 1, kind: input, shape index: {}]
  %s2 = inlined_call_operand.vmem [shape: f32[32,32], index: 2, kind: input, shape index: {}]
  %s3 = inlined_call_operand.vmem [shape: f32[48,64], index: 3, kind: input, shape index: {}]
  %s4 = inlined_call_operand.hbm [shape: f32[32,32], index: 4, kind: input, shape index: {}]
  %s5 = inlined_call_operand.vmem [shape: f32[1,32], index: 5, kind: input, shape index: {}]
  %s6 = inlined_call_operand.hbm [shape: f32[32,32], index: 6, kind: output, shape index: {}]
  %s7 = sld [smem:[#allocation0]]
  $region61: #{tpu_custom_call.1} parent=0
    _
  %s9 = ssub.s32 1, %s7
  %s10 = scalar_select 0, %s9, %s7
  $region1: #{tpu_custom_call.1} parent=0
    #allocation5 [shape = 'u8[16384]{0}', space=vmem, size = 0x4000, scoped, tag = 'input window, operand 4, single buffered']
    #allocation6 [shape = 's32[2]{0}', space=sflag, size = 0x8, scoped, tag = 'scoped memory for tpu_custom_call.1']
    #allocation7 [shape = 's32[2]{0}', space=sflag, size = 0x8, scoped, tag = 'scoped memory for tpu_custom_call.1']
    #allocation8 [shape = 'u8[16384]{0}', space=vmem, size = 0x4000, scoped, tag = 'output window, operand 0']
    %11 = vsyncpa [#allocation6], 0
    %12 = vsyncpa [#allocation7], 0
    %s13 = scalar_lea.sflag [#allocation7], 1
    %14 = vsyncpa %s13, 0
    loop: start=0, step=1, limit=4
    $region2: #{tpu_custom_call.1} parent=1 // loop_pre_header
      _
    $region3: #{tpu_custom_call.1} parent=1 // loop_header
      %s16 = sphi 0, %s20
      %p17 = scmp.ge.s32.totalorder %s16, 4
      %s26 = sphi 0, %s28
      %s29 = sphi 0, %s26
      %s30 = sphi 0, %s29
      %s46 = sphi 0, %s30
      %s52 = sphi 0, %s54
      %s55 = sphi 0, %s52
      %s56 = sphi 0, %s55
      %s72 = sphi 0, %s56
      %s76 = sphi 0, %s76
      %s78 = sphi 0, %s76
      %s79 = sphi 0, %s78
      %s93 = sphi 0, %s79
      %s97 = sphi 0, %s97
      %s99 = sphi 0, %s97
      %s100 = sphi 0, %s99
      %s114 = sphi 0, %s100
      %s118 = sphi 0, %s118
      %s120 = sphi 0, %s118
      %s121 = sphi 0, %s120
      %s135 = sphi 0, %s121
      %s139 = sphi 0, %s139
      %s141 = sphi 0, %s139
      %s142 = sphi 0, %s141
      %s156 = sphi 0, %s142
      %s162 = sphi 0, %s164
      %s165 = sphi 0, %s162
      %s166 = sphi 0, %s165
      %s182 = sphi 0, %s166
    $region4: #{tpu_custom_call.1} parent=1 // loop_header_branch
      %19 = sbr.rel (%p17) target = $region8
    $region5: #{tpu_custom_call.1} parent=1 // loop_body
      %s21 = ssub.s32 %s16, 1
      %s22 = ssub.s32 %s16, 2
      %s23 = sadd.s32 %s16, 1
      %s24 = ssub.s32 %s16, %s23
      %p25 = scmp.eq.s32.totalorder %s24, 0
      %s27 = sadd.s32 %s26, 1
      %s28 = scalar_select %p25, %s26, %s27
      %p31 = pneg %p25
      %p32 = scmp.eq.s32.totalorder %s16, 1
      %p33 = por %p31, %p32
      %p34 = scmp.ne.s32.totalorder %s26, %s29
      %p35 = scmp.eq.s32.totalorder %s16, 0
      %p36 = por %p34, %p35
      %p37 = scmp.ne.s32.totalorder %s26, %s29
      %p38 = scmp.eq.s32.totalorder %s21, 1
      %p39 = por %p37, %p38
      %p40 = scmp.ne.s32.totalorder %s29, %s30
      %p41 = scmp.eq.s32.totalorder %s21, 0
      %p42 = por %p40, %p41
      %p43 = scmp.ne.s32.totalorder %s29, %s30
      %p44 = scmp.eq.s32.totalorder %s22, 1
      %p45 = por %p43, %p44
      %p47 = scmp.ne.s32.totalorder %s30, %s46
      %p48 = scmp.eq.s32.totalorder %s22, 0
      %p49 = por %p47, %p48
      %s50 = ssub.s32 %s16, %s23
      %p51 = scmp.eq.s32.totalorder %s50, 0
      %s53 = sadd.s32 %s52, 1
      %s54 = scalar_select %p51, %s52, %s53
      %p57 = pneg %p51
      %p58 = scmp.eq.s32.totalorder %s16, 1
      %p59 = por %p57, %p58
      %p60 = scmp.ne.s32.totalorder %s52, %s55
      %p61 = scmp.eq.s32.totalorder %s16, 0
      %p62 = por %p60, %p61
      %p63 = scmp.ne.s32.totalorder %s52, %s55
      %p64 = scmp.eq.s32.totalorder %s21, 1
      %p65 = por %p63, %p64
      %p66 = scmp.ne.s32.totalorder %s55, %s56
      %p67 = scmp.eq.s32.totalorder %s21, 0
      %p68 = por %p66, %p67
      %p69 = scmp.ne.s32.totalorder %s55, %s56
      %p70 = scmp.eq.s32.totalorder %s22, 1
      %p71 = por %p69, %p70
      %p73 = scmp.ne.s32.totalorder %s56, %s72
      %p74 = scmp.eq.s32.totalorder %s22, 0
      %p75 = por %p73, %p74
      %s77 = sadd.s32 %s76, 1
      %p80 = scmp.eq.s32.totalorder %s16, 1
      %p81 = scmp.ne.s32.totalorder %s76, %s78
      %p82 = scmp.eq.s32.totalorder %s16, 0
      %p83 = por %p81, %p82
      %p84 = scmp.ne.s32.totalorder %s76, %s78
      %p85 = scmp.eq.s32.totalorder %s21, 1
      %p86 = por %p84, %p85
      %p87 = scmp.ne.s32.totalorder %s78, %s79
      %p88 = scmp.eq.s32.totalorder %s21, 0
      %p89 = por %p87, %p88
      %p90 = scmp.ne.s32.totalorder %s78, %s79
      %p91 = scmp.eq.s32.totalorder %s22, 1
      %p92 = por %p90, %p91
      %p94 = scmp.ne.s32.totalorder %s79, %s93
      %p95 = scmp.eq.s32.totalorder %s22, 0
      %p96 = por %p94, %p95
      %s98 = sadd.s32 %s97, 1
      %p101 = scmp.eq.s32.totalorder %s16, 1
      %p102 = scmp.ne.s32.totalorder %s97, %s99
      %p103 = scmp.eq.s32.totalorder %s16, 0
      %p104 = por %p102, %p103
      %p105 = scmp.ne.s32.totalorder %s97, %s99
      %p106 = scmp.eq.s32.totalorder %s21, 1
      %p107 = por %p105, %p106
      %p108 = scmp.ne.s32.totalorder %s99, %s100
      %p109 = scmp.eq.s32.totalorder %s21, 0
      %p110 = por %p108, %p109
      %p111 = scmp.ne.s32.totalorder %s99, %s100
      %p112 = scmp.eq.s32.totalorder %s22, 1
      %p113 = por %p111, %p112
      %p115 = scmp.ne.s32.totalorder %s100, %s114
      %p116 = scmp.eq.s32.totalorder %s22, 0
      %p117 = por %p115, %p116
      %s119 = sadd.s32 %s118, 1
      %p122 = scmp.eq.s32.totalorder %s16, 1
      %p123 = scmp.ne.s32.totalorder %s118, %s120
      %p124 = scmp.eq.s32.totalorder %s16, 0
      %p125 = por %p123, %p124
      %p126 = scmp.ne.s32.totalorder %s118, %s120
      %p127 = scmp.eq.s32.totalorder %s21, 1
      %p128 = por %p126, %p127
      %p129 = scmp.ne.s32.totalorder %s120, %s121
      %p130 = scmp.eq.s32.totalorder %s21, 0
      %p131 = por %p129, %p130
      %p132 = scmp.ne.s32.totalorder %s120, %s121
      %p133 = scmp.eq.s32.totalorder %s22, 1
      %p134 = por %p132, %p133
      %p136 = scmp.ne.s32.totalorder %s121, %s135
      %p137 = scmp.eq.s32.totalorder %s22, 0
      %p138 = por %p136, %p137
      %s140 = sadd.s32 %s139, 1
      %p143 = scmp.eq.s32.totalorder %s16, 1
      %p144 = scmp.ne.s32.totalorder %s139, %s141
      %p145 = scmp.eq.s32.totalorder %s16, 0
      %p146 = por %p144, %p145
      %p147 = scmp.ne.s32.totalorder %s139, %s141
      %p148 = scmp.eq.s32.totalorder %s21, 1
      %p149 = por %p147, %p148
      %p150 = scmp.ne.s32.totalorder %s141, %s142
      %p151 = scmp.eq.s32.totalorder %s21, 0
      %p152 = por %p150, %p151
      %p153 = scmp.ne.s32.totalorder %s141, %s142
      %p154 = scmp.eq.s32.totalorder %s22, 1
      %p155 = por %p153, %p154
      %p157 = scmp.ne.s32.totalorder %s142, %s156
      %p158 = scmp.eq.s32.totalorder %s22, 0
      %p159 = por %p157, %p158
      %s160 = ssub.s32 %s16, %s23
      %p161 = scmp.eq.s32.totalorder %s160, 0
      %s163 = sadd.s32 %s162, 1
      %s164 = scalar_select %p161, %s162, %s163
      %p167 = pneg %p161
      %p168 = scmp.eq.s32.totalorder %s16, 1
      %p169 = por %p167, %p168
      %p170 = scmp.ne.s32.totalorder %s162, %s165
      %p171 = scmp.eq.s32.totalorder %s16, 0
      %p172 = por %p170, %p171
      %p173 = scmp.ne.s32.totalorder %s162, %s165
      %p174 = scmp.eq.s32.totalorder %s21, 1
      %p175 = por %p173, %p174
      %p176 = scmp.ne.s32.totalorder %s165, %s166
      %p177 = scmp.eq.s32.totalorder %s21, 0
      %p178 = por %p176, %p177
      %p179 = scmp.ne.s32.totalorder %s165, %s166
      %p180 = scmp.eq.s32.totalorder %s22, 1
      %p181 = por %p179, %p180
      %p183 = scmp.ne.s32.totalorder %s166, %s182
      %p184 = scmp.eq.s32.totalorder %s22, 0
      %p185 = por %p183, %p184
      %p186 = scmp.le.s32.totalorder 1, %s16
      %p187 = scmp.lt.s32.totalorder %s16, 3
      %p188 = pnand %p186, %p187
      %p189 = pneg %p188
      // Predicated region
      $region9: #{tpu_custom_call.1} parent=5 // pred_check
        _
      $region10: #{tpu_custom_call.1} parent=5 // pred_check_branch
        %191 = sbr.rel (%p188) target = $region12
      $region11: #{tpu_custom_call.1} parent=5 // pred_region
        %s192 = ssub.s32 %s16, 1
        // Predicated region
        $region13: #{tpu_custom_call.1} parent=11 // pred_check
          %p193 = pneg %p89
        $region14: #{tpu_custom_call.1} parent=11 // pred_check_branch
          %195 = sbr.rel (%p193) target = $region16
        $region15: #{tpu_custom_call.1} parent=11 // pred_region
          _
        $region16: #{tpu_custom_call.1} parent=11 // pred_fallthru
          _
        // Predicated region
        $region17: #{tpu_custom_call.1} parent=11 // pred_check
          %p196 = pneg %p110
        $region18: #{tpu_custom_call.1} parent=11 // pred_check_branch
          %198 = sbr.rel (%p196) target = $region20
        $region19: #{tpu_custom_call.1} parent=11 // pred_region
          _
        $region20: #{tpu_custom_call.1} parent=11 // pred_fallthru
          _
        // Predicated region
        $region21: #{tpu_custom_call.1} parent=11 // pred_check
          %p199 = pneg %p131
        $region22: #{tpu_custom_call.1} parent=11 // pred_check_branch
          %201 = sbr.rel (%p199) target = $region24
        $region23: #{tpu_custom_call.1} parent=11 // pred_region
          %s203 = ssub.s32 512, 512
          %204 = vsyncadd [#allocation6], %s203
          %s205 = sshll.u32 [#allocation5], 4
          %s206 = int_to_ptr.vmem [resolvable:$true] %s205
          %211 = dma.hbm_to_vmem [thread:$0]  %s4, 512, %s206, [#allocation6], 128, 128, 8
        $region24: #{tpu_custom_call.1} parent=11 // pred_fallthru
          _
        // Predicated region
        $region25: #{tpu_custom_call.1} parent=11 // pred_check
          %p212 = pneg %p152
        $region26: #{tpu_custom_call.1} parent=11 // pred_check_branch
          %214 = sbr.rel (%p212) target = $region28
        $region27: #{tpu_custom_call.1} parent=11 // pred_region
          _
        $region28: #{tpu_custom_call.1} parent=11 // pred_fallthru
          _
      $region12: #{tpu_custom_call.1} parent=5 // pred_fallthru
        _
      %p215 = scmp.lt.s32.totalorder %s16, 2
      // Predicated region
      $region29: #{tpu_custom_call.1} parent=5 // pred_check
        %p216 = pneg %p215
      $region30: #{tpu_custom_call.1} parent=5 // pred_check_branch
        %218 = sbr.rel (%p216) target = $region32
      $region31: #{tpu_custom_call.1} parent=5 // pred_region
        // Predicated region
        $region33: #{tpu_custom_call.1} parent=31 // pred_check
          %p219 = pneg %p36
        $region34: #{tpu_custom_call.1} parent=31 // pred_check_branch
          %221 = sbr.rel (%p219) target = $region36
        $region35: #{tpu_custom_call.1} parent=31 // pred_region
          %s222 = smul.u32 2, %s16
          %p223 = scmp.lt.s32.totalorder %s222, 3
          %s224 = scalar_select %p223, %s222, 3
          %s225 = smul.addr %s224, 8
          %s226 = scalar_lea.vmem %s0, %s225
          %s227 = smul.u32 2, %s16
        $region36: #{tpu_custom_call.1} parent=31 // pred_fallthru
          _
        // Predicated region
        $region37: #{tpu_custom_call.1} parent=31 // pred_check
          %p228 = pneg %p62
        $region38: #{tpu_custom_call.1} parent=31 // pred_check_branch
          %230 = sbr.rel (%p228) target = $region40
        $region39: #{tpu_custom_call.1} parent=31 // pred_region
          %s231 = smul.u32 4, %s16
          %p232 = scmp.lt.s32.totalorder %s231, 7
          %s233 = scalar_select %p232, %s231, 7
          %s234 = smul.addr %s233, 8
          %s235 = scalar_lea.vmem %s1, %s234
          %s236 = smul.u32 4, %s16
        $region40: #{tpu_custom_call.1} parent=31 // pred_fallthru
          _
      $region32: #{tpu_custom_call.1} parent=5 // pred_fallthru
        _
      %p237 = scmp.le.s32.totalorder 1, %s16
      %p238 = scmp.lt.s32.totalorder %s16, 3
      %p239 = pnand %p237, %p238
      %p240 = pneg %p239
      // Predicated region
      $region41: #{tpu_custom_call.1} parent=5 // pred_check
        _
      $region42: #{tpu_custom_call.1} parent=5 // pred_check_branch
        %242 = sbr.rel (%p239) target = $region44
      $region43: #{tpu_custom_call.1} parent=5 // pred_region
        %s243 = ssub.s32 %s16, 1
        // Predicated region
        $region45: #{tpu_custom_call.1} parent=43 // pred_check
          %p244 = pneg %p131
        $region46: #{tpu_custom_call.1} parent=43 // pred_check_branch
          %246 = sbr.rel (%p244) target = $region48
        $region47: #{tpu_custom_call.1} parent=43 // pred_region
          %247 = dma.done [#allocation6], 512
        $region48: #{tpu_custom_call.1} parent=43 // pred_fallthru
          _
        %s248 = smul.u32 2, %s21
        %p249 = scmp.lt.s32.totalorder %s248, 3
        %s250 = scalar_select %p249, %s248, 3
        %s251 = smul.addr %s250, 8
        %s252 = scalar_lea.vmem %s0, %s251
        %p253 = pneg %p42
        %p254 = pneg %p39
        %s255 = smul.u32 4, %s21
        %p256 = scmp.lt.s32.totalorder %s255, 7
        %s257 = scalar_select %p256, %s255, 7
        %s258 = smul.addr %s257, 8
        %s259 = scalar_lea.vmem %s1, %s258
        %p260 = pneg %p68
        %p261 = pneg %p65
        %p262 = pneg %p89
        %p263 = pneg %p86
        %p264 = pneg %p110
        %p265 = pneg %p107
        %p266 = pneg %p131
        %p267 = pneg %p128
        %p268 = pneg %p152
        %p269 = pneg %p149
        %p270 = pneg %p178
        %p271 = pneg %p175
        %s272 = sand.u32 %s165, 1
        %s273 = scalar_lea.sflag [#allocation7], %s272
        %s274 = sand.u32 %s165, 1
        %s275 = smul.addr %s274, 16
        %s276 = scalar_lea.vmem [#allocation8], %s275
        %s277 = smul.u32 2, %s21
        %p278 = scmp.lt.s32.totalorder %s277, 3
        %s279 = scalar_select %p278, %s277, 3
        %s280 = smul.addr %s279, 8
        %s281 = scalar_lea.vmem %s0, %s280
        %s282 = smul.u32 2, %s21
        %s283 = smul.u32 4, %s21
        %p284 = scmp.lt.s32.totalorder %s283, 7
        %s285 = scalar_select %p284, %s283, 7
        %s286 = smul.addr %s285, 8
        %s287 = scalar_lea.vmem %s1, %s286
        %s288 = smul.u32 4, %s21
        %s289 = smul.u32 2, %s21
        %v290 = vld [vmem:[%s281] sm:$0xff]
        %v291 = vld [vmem:[%s281 + $0x8] sm:$0xff]
        %v292 = vld [vmem:[%s2] sm:$0xff]
        %v293 = vld [vmem:[%s2 + $0x8] sm:$0xff]
        %v294 = vld [vmem:[%s2 + $0x10] sm:$0xff]
        %v295 = vld [vmem:[%s2 + $0x18] sm:$0xff]
        %vm296 = vcmask 261120
        %v298 = vsel %vm296, %v290, 0
        %v301 = vsel %vm296, %v291, 0
        %303 = vmatprep.subr.mxu0 0.0
        %304 = vmatpush1.msra.mxu0 %v292
        %305 = vmatprep.subr.mxu0 0.0
        %306 = vmatpush1.msra.mxu0 %v293
        %307 = vmatprep.subr.mxu0 0.0
        %308 = vmatpush1.msra.mxu0 %v294
        %309 = vmatprep.subr.mxu0 0.0
        %310 = vmatpush1.msra.mxu0 %v295
        %311 = vmatprep.subr.mxu0 0.0
        %312 = vmatpush1.msra.mxu0 0.0
        %313 = vmatprep.subr.mxu0 0.0
        %314 = vmatpush1.msra.mxu0 0.0
        %315 = vmatprep.subr.mxu0 0.0
        %316 = vmatpush1.msra.mxu0 0.0
        %317 = vmatprep.subr.mxu0 0.0
        %318 = vmatpush1.msra.mxu0 0.0
        %319 = vmatprep.subr.mxu0 0.0
        %320 = vmatpush1.msra.mxu0 0.0
        %321 = vmatprep.subr.mxu0 0.0
        %322 = vmatpush1.msra.mxu0 0.0
        %323 = vmatprep.subr.mxu0 0.0
        %324 = vmatpush1.msra.mxu0 0.0
        %325 = vmatprep.subr.mxu0 0.0
        %326 = vmatpush1.msra.mxu0 0.0
        %327 = vmatprep.subr.mxu0 0.0
        %328 = vmatpush1.msra.mxu0 0.0
        %329 = vmatprep.subr.mxu0 0.0
        %330 = vmatpush1.msra.mxu0 0.0
        %331 = vmatprep.subr.mxu0 0.0
        %332 = vmatpush1.msra.mxu0 0.0
        %333 = vmatprep.subr.mxu0 0.0
        %334 = vmatpush1.msra.mxu0 0.0
        %335 = vmatprep.subr.mxu0 0.0
        %336 = vmatpush1.msra.mxu0 0.0
        %337 = vmatprep.subr.mxu0 0.0
        %338 = vmatpush1.msra.mxu0 0.0
        %339 = vmatprep.subr.mxu0 0.0
        %340 = vmatpush1.msra.mxu0 0.0
        %341 = vmatprep.subr.mxu0 0.0
        %342 = vmatpush1.msra.mxu0 0.0
        %343 = vmatprep.subr.mxu0 0.0
        %344 = vmatpush1.msra.mxu0 0.0
        %345 = vmatprep.subr.mxu0 0.0
        %346 = vmatpush1.msra.mxu0 0.0
        %347 = vmatprep.subr.mxu0 0.0
        %348 = vmatpush1.msra.mxu0 0.0
        %349 = vmatprep.subr.mxu0 0.0
        %350 = vmatpush1.msra.mxu0 0.0
        %351 = vmatprep.subr.mxu0 0.0
        %352 = vmatpush1.msra.mxu0 0.0
        %353 = vmatprep.subr.mxu0 0.0
        %354 = vmatpush1.msra.mxu0 0.0
        %355 = vmatprep.subr.mxu0 0.0
        %356 = vmatpush1.msra.mxu0 0.0
        %357 = vmatprep.subr.mxu0 0.0
        %358 = vmatpush1.msra.mxu0 0.0
        %359 = vmatprep.subr.mxu0 0.0
        %360 = vmatpush1.msra.mxu0 0.0
        %361 = vmatprep.subr.mxu0 0.0
        %362 = vmatpush1.msra.mxu0 0.0
        %363 = vmatprep.subr.mxu0 0.0
        %364 = vmatpush1.msra.mxu0 0.0
        %365 = vmatprep.subr.mxu0 0.0
        %366 = vmatpush1.msra.mxu0 0.0
        %367 = vmatprep.mubr.f32.mxu0 0.0
        %368 = vmatmul.mubr.f32.gmra.mrb[0].mxu0 %v298
        %v369 = vpop.f32.mrb[0].mxu0
        %v370 = vadd.f32 0.0, %v369
        %v371 = vpop.f32.mrb[0].mxu0
        %372 = vmatprep.mubr.f32.mxu0 0.0
        %373 = vmatmul.mubr.f32.gmra.mrb[0].mxu0 %v301
        %v374 = vpop.f32.mrb[0].mxu0
        %v375 = vadd.f32 0.0, %v374
        %v376 = vpop.f32.mrb[0].mxu0
        %377 = vdwg.mxu0
        %378 = vst.msk [vmem:[#allocation2] sm:$0xff] %vm296, %v370
        %379 = vst.msk [vmem:[#allocation2 + $0x8] sm:$0xff] %vm296, %v375
        %v380 = vld [vmem:[%s287] sm:$0xff]
        %v381 = vld [vmem:[%s287 + $0x8] sm:$0xff]
        %v382 = vld [vmem:[%s287 + $0x10] sm:$0xff]
        %v383 = vld [vmem:[%s287 + $0x18] sm:$0xff]
        %v384 = vld [vmem:[%s3] sm:$0xff]
        %v385 = vld [vmem:[%s3 + $0x8] sm:$0xff]
        %v386 = vld [vmem:[%s3 + $0x10] sm:$0xff]
        %v387 = vld [vmem:[%s3 + $0x18] sm:$0xff]
        %v388 = vld [vmem:[%s3 + $0x20] sm:$0xff]
        %v389 = vld [vmem:[%s3 + $0x28] sm:$0xff]
        %vm390 = vcmask 392192
        %v392 = vsel %vm390, %v380, 0
        %v395 = vsel %vm390, %v381, 0
        %v398 = vsel %vm390, %v382, 0
        %v401 = vsel %vm390, %v383, 0
        %403 = vmatprep.subr.mxu0 0.0
        %404 = vmatpush1.msra.mxu0 %v384
        %405 = vmatprep.subr.mxu0 0.0
        %406 = vmatpush1.msra.mxu0 %v385
        %407 = vmatprep.subr.mxu0 0.0
        %408 = vmatpush1.msra.mxu0 %v386
        %409 = vmatprep.subr.mxu0 0.0
        %410 = vmatpush1.msra.mxu0 %v387
        %411 = vmatprep.subr.mxu0 0.0
        %412 = vmatpush1.msra.mxu0 %v388
        %413 = vmatprep.subr.mxu0 0.0
        %414 = vmatpush1.msra.mxu0 %v389
        %415 = vmatprep.subr.mxu0 0.0
        %416 = vmatpush1.msra.mxu0 0.0
        %417 = vmatprep.subr.mxu0 0.0
        %418 = vmatpush1.msra.mxu0 0.0
        %419 = vmatprep.subr.mxu0 0.0
        %420 = vmatpush1.msra.mxu0 0.0
        %421 = vmatprep.subr.mxu0 0.0
        %422 = vmatpush1.msra.mxu0 0.0
        %423 = vmatprep.subr.mxu0 0.0
        %424 = vmatpush1.msra.mxu0 0.0
        %425 = vmatprep.subr.mxu0 0.0
        %426 = vmatpush1.msra.mxu0 0.0
        %427 = vmatprep.subr.mxu0 0.0
        %428 = vmatpush1.msra.mxu0 0.0
        %429 = vmatprep.subr.mxu0 0.0
        %430 = vmatpush1.msra.mxu0 0.0
        %431 = vmatprep.subr.mxu0 0.0
        %432 = vmatpush1.msra.mxu0 0.0
        %433 = vmatprep.subr.mxu0 0.0
        %434 = vmatpush1.msra.mxu0 0.0
        %435 = vmatprep.subr.mxu0 0.0
        %436 = vmatpush1.msra.mxu0 0.0
        %437 = vmatprep.subr.mxu0 0.0
        %438 = vmatpush1.msra.mxu0 0.0
        %439 = vmatprep.subr.mxu0 0.0
        %440 = vmatpush1.msra.mxu0 0.0
        %441 = vmatprep.subr.mxu0 0.0
        %442 = vmatpush1.msra.mxu0 0.0
        %443 = vmatprep.subr.mxu0 0.0
        %444 = vmatpush1.msra.mxu0 0.0
        %445 = vmatprep.subr.mxu0 0.0
        %446 = vmatpush1.msra.mxu0 0.0
        %447 = vmatprep.subr.mxu0 0.0
        %448 = vmatpush1.msra.mxu0 0.0
        %449 = vmatprep.subr.mxu0 0.0
        %450 = vmatpush1.msra.mxu0 0.0
        %451 = vmatprep.subr.mxu0 0.0
        %452 = vmatpush1.msra.mxu0 0.0
        %453 = vmatprep.subr.mxu0 0.0
        %454 = vmatpush1.msra.mxu0 0.0
        %455 = vmatprep.subr.mxu0 0.0
        %456 = vmatpush1.msra.mxu0 0.0
        %457 = vmatprep.subr.mxu0 0.0
        %458 = vmatpush1.msra.mxu0 0.0
        %459 = vmatprep.subr.mxu0 0.0
        %460 = vmatpush1.msra.mxu0 0.0
        %461 = vmatprep.subr.mxu0 0.0
        %462 = vmatpush1.msra.mxu0 0.0
        %463 = vmatprep.subr.mxu0 0.0
        %464 = vmatpush1.msra.mxu0 0.0
        %465 = vmatprep.subr.mxu0 0.0
        %466 = vmatpush1.msra.mxu0 0.0
        %467 = vmatprep.mubr.f32.mxu0 0.0
        %468 = vmatmul.mubr.f32.gmra.mrb[0].mxu0 %v392
        %v469 = vpop.f32.mrb[0].mxu0
        %v470 = vadd.f32 0.0, %v469
        %v471 = vpop.f32.mrb[0].mxu0
        %472 = vmatprep.mubr.f32.mxu0 0.0
        %473 = vmatmul.mubr.f32.gmra.mrb[0].mxu0 %v395
        %v474 = vpop.f32.mrb[0].mxu0
        %v475 = vadd.f32 0.0, %v474
        %v476 = vpop.f32.mrb[0].mxu0
        %477 = vmatprep.mubr.f32.mxu0 0.0
        %478 = vmatmul.mubr.f32.gmra.mrb[0].mxu0 %v398
        %v479 = vpop.f32.mrb[0].mxu0
        %v480 = vadd.f32 0.0, %v479
        %v481 = vpop.f32.mrb[0].mxu0
        %482 = vmatprep.mubr.f32.mxu0 0.0
        %483 = vmatmul.mubr.f32.gmra.mrb[0].mxu0 %v401
        %v484 = vpop.f32.mrb[0].mxu0
        %v485 = vadd.f32 0.0, %v484
        %v486 = vpop.f32.mrb[0].mxu0
        %487 = vdwg.mxu0
        %vm488 = vcmask 523264
        %489 = vst.msk [vmem:[#allocation3] sm:$0xff] %vm488, %v470
        %490 = vst.msk [vmem:[#allocation3 + $0x8] sm:$0xff] %vm488, %v475
        %491 = vst.msk [vmem:[#allocation3 + $0x10] sm:$0xff] %vm488, %v480
        %492 = vst.msk [vmem:[#allocation3 + $0x18] sm:$0xff] %vm488, %v485
        %v493 = vlaneseq
        %v494 = vand.u32 %v493, 127
        %vm495 = vcmp.lt.s32.totalorder %v494, 12
        %v496 = vld [vmem:[#allocation2] sm:$0xff]
        %v497 = vld [vmem:[#allocation2 + $0x8] sm:$0xff]
        %v498 = vld [vmem:[#allocation3] sm:$0xff]
        %v499 = vld [vmem:[#allocation3 + $0x8] sm:$0xff]
        %v500 = vld [vmem:[#allocation3 + $0x10] sm:$0xff]
        %v501 = vld [vmem:[#allocation3 + $0x18] sm:$0xff]
        %vm502 = vcmask 64512
        %v504 = vsel %vm502, %v496, 0
        %v507 = vsel %vm502, %v498, 0
        %v510 = vsel %vm502, %v499, 0
        %512 = vmatprep.subr.mxu0 0.0
        %513 = vmatpush1.xpose.msra.mxu0 %v507
        %514 = vmatprep.subr.mxu0 0.0
        %515 = vmatpush1.xpose.msra.mxu0 %v510
        %516 = vmatprep.subr.mxu0 0.0
        %517 = vmatpush1.xpose.msra.mxu0 0.0
        %518 = vmatprep.subr.mxu0 0.0
        %519 = vmatpush1.xpose.msra.mxu0 0.0
        %520 = vmatprep.subr.mxu0 0.0
        %521 = vmatpush1.xpose.msra.mxu0 0.0
        %522 = vmatprep.subr.mxu0 0.0
        %523 = vmatpush1.xpose.msra.mxu0 0.0
        %524 = vmatprep.subr.mxu0 0.0
        %525 = vmatpush1.xpose.msra.mxu0 0.0
        %526 = vmatprep.subr.mxu0 0.0
        %527 = vmatpush1.xpose.msra.mxu0 0.0
        %528 = vmatprep.subr.mxu0 0.0
        %529 = vmatpush1.xpose.msra.mxu0 0.0
        %530 = vmatprep.subr.mxu0 0.0
        %531 = vmatpush1.xpose.msra.mxu0 0.0
        %532 = vmatprep.subr.mxu0 0.0
        %533 = vmatpush1.xpose.msra.mxu0 0.0
        %534 = vmatprep.subr.mxu0 0.0
        %535 = vmatpush1.xpose.msra.mxu0 0.0
        %536 = vmatprep.subr.mxu0 0.0
        %537 = vmatpush1.xpose.msra.mxu0 0.0
        %538 = vmatprep.subr.mxu0 0.0
        %539 = vmatpush1.xpose.msra.mxu0 0.0
        %540 = vmatprep.subr.mxu0 0.0
        %541 = vmatpush1.xpose.msra.mxu0 0.0
        %542 = vmatprep.subr.mxu0 0.0
        %543 = vmatpush1.xpose.msra.mxu0 0.0
        %544 = vmatprep.subr.mxu0 0.0
        %545 = vmatpush1.xpose.msra.mxu0 0.0
        %546 = vmatprep.subr.mxu0 0.0
        %547 = vmatpush1.xpose.msra.mxu0 0.0
        %548 = vmatprep.subr.mxu0 0.0
        %549 = vmatpush1.xpose.msra.mxu0 0.0
        %550 = vmatprep.subr.mxu0 0.0
        %551 = vmatpush1.xpose.msra.mxu0 0.0
        %552 = vmatprep.subr.mxu0 0.0
        %553 = vmatpush1.xpose.msra.mxu0 0.0
        %554 = vmatprep.subr.mxu0 0.0
        %555 = vmatpush1.xpose.msra.mxu0 0.0
        %556 = vmatprep.subr.mxu0 0.0
        %557 = vmatpush1.xpose.msra.mxu0 0.0
        %558 = vmatprep.subr.mxu0 0.0
        %559 = vmatpush1.xpose.msra.mxu0 0.0
        %560 = vmatprep.subr.mxu0 0.0
        %561 = vmatpush1.xpose.msra.mxu0 0.0
        %562 = vmatprep.subr.mxu0 0.0
        %563 = vmatpush1.xpose.msra.mxu0 0.0
        %564 = vmatprep.subr.mxu0 0.0
        %565 = vmatpush1.xpose.msra.mxu0 0.0
        %566 = vmatprep.subr.mxu0 0.0
        %567 = vmatpush1.xpose.msra.mxu0 0.0
        %568 = vmatprep.subr.mxu0 0.0
        %569 = vmatpush1.xpose.msra.mxu0 0.0
        %570 = vmatprep.subr.mxu0 0.0
        %571 = vmatpush1.xpose.msra.mxu0 0.0
        %572 = vmatprep.subr.mxu0 0.0
        %573 = vmatpush1.xpose.msra.mxu0 0.0
        %574 = vmatprep.subr.mxu0 0.0
        %575 = vmatpush1.xpose.msra.mxu0 0.0
        %576 = vmatprep.mubr.f32.mxu0 0.0
        %577 = vmatmul.mubr.f32.gmra.mrb[0].mxu0 %v504
        %v578 = vpop.f32.mrb[0].mxu0
        %v579 = vadd.f32 0.0, %v578
        %v580 = vpop.f32.mrb[0].mxu0
        %581 = vdwg.mxu0
        %v583 = vsel %vm502, %v497, 0
        %v586 = vsel %vm502, %v500, 0
        %v589 = vsel %vm502, %v501, 0
        %591 = vmatprep.subr.mxu0 0.0
        %592 = vmatpush1.xpose.msra.mxu0 %v586
        %593 = vmatprep.subr.mxu0 0.0
        %594 = vmatpush1.xpose.msra.mxu0 %v589
        %595 = vmatprep.subr.mxu0 0.0
        %596 = vmatpush1.xpose.msra.mxu0 0.0
        %597 = vmatprep.subr.mxu0 0.0
        %598 = vmatpush1.xpose.msra.mxu0 0.0
        %599 = vmatprep.subr.mxu0 0.0
        %600 = vmatpush1.xpose.msra.mxu0 0.0
        %601 = vmatprep.subr.mxu0 0.0
        %602 = vmatpush1.xpose.msra.mxu0 0.0
        %603 = vmatprep.subr.mxu0 0.0
        %604 = vmatpush1.xpose.msra.mxu0 0.0
        %605 = vmatprep.subr.mxu0 0.0
        %606 = vmatpush1.xpose.msra.mxu0 0.0
        %607 = vmatprep.subr.mxu0 0.0
        %608 = vmatpush1.xpose.msra.mxu0 0.0
        %609 = vmatprep.subr.mxu0 0.0
        %610 = vmatpush1.xpose.msra.mxu0 0.0
        %611 = vmatprep.subr.mxu0 0.0
        %612 = vmatpush1.xpose.msra.mxu0 0.0
        %613 = vmatprep.subr.mxu0 0.0
        %614 = vmatpush1.xpose.msra.mxu0 0.0
        %615 = vmatprep.subr.mxu0 0.0
        %616 = vmatpush1.xpose.msra.mxu0 0.0
        %617 = vmatprep.subr.mxu0 0.0
        %618 = vmatpush1.xpose.msra.mxu0 0.0
        %619 = vmatprep.subr.mxu0 0.0
        %620 = vmatpush1.xpose.msra.mxu0 0.0
        %621 = vmatprep.subr.mxu0 0.0
        %622 = vmatpush1.xpose.msra.mxu0 0.0
        %623 = vmatprep.subr.mxu0 0.0
        %624 = vmatpush1.xpose.msra.mxu0 0.0
        %625 = vmatprep.subr.mxu0 0.0
        %626 = vmatpush1.xpose.msra.mxu0 0.0
        %627 = vmatprep.subr.mxu0 0.0
        %628 = vmatpush1.xpose.msra.mxu0 0.0
        %629 = vmatprep.subr.mxu0 0.0
        %630 = vmatpush1.xpose.msra.mxu0 0.0
        %631 = vmatprep.subr.mxu0 0.0
        %632 = vmatpush1.xpose.msra.mxu0 0.0
        %633 = vmatprep.subr.mxu0 0.0
        %634 = vmatpush1.xpose.msra.mxu0 0.0
        %635 = vmatprep.subr.mxu0 0.0
        %636 = vmatpush1.xpose.msra.mxu0 0.0
        %637 = vmatprep.subr.mxu0 0.0
        %638 = vmatpush1.xpose.msra.mxu0 0.0
        %639 = vmatprep.subr.mxu0 0.0
        %640 = vmatpush1.xpose.msra.mxu0 0.0
        %641 = vmatprep.subr.mxu0 0.0
        %642 = vmatpush1.xpose.msra.mxu0 0.0
        %643 = vmatprep.subr.mxu0 0.0
        %644 = vmatpush1.xpose.msra.mxu0 0.0
        %645 = vmatprep.subr.mxu0 0.0
        %646 = vmatpush1.xpose.msra.mxu0 0.0
        %647 = vmatprep.subr.mxu0 0.0
        %648 = vmatpush1.xpose.msra.mxu0 0.0
        %649 = vmatprep.subr.mxu0 0.0
        %650 = vmatpush1.xpose.msra.mxu0 0.0
        %651 = vmatprep.subr.mxu0 0.0
        %652 = vmatpush1.xpose.msra.mxu0 0.0
        %653 = vmatprep.subr.mxu0 0.0
        %654 = vmatpush1.xpose.msra.mxu0 0.0
        %655 = vmatprep.mubr.f32.mxu0 0.0
        %656 = vmatmul.mubr.f32.gmra.mrb[0].mxu0 %v583
        %v657 = vpop.f32.mrb[0].mxu0
        %v658 = vadd.f32 0.0, %v657
        %v659 = vpop.f32.mrb[0].mxu0
        %660 = vdwg.mxu0
        %v661 = vsel %vm495, %v579, -1e+30
        %v662 = vsel %vm495, %v658, -1e+30
        %vm663 = vcmask 130048
        %v664 = vsel %vm663, %v661, -inf
        %665 = vmax.xlane.f32.xlu0 %v664
        %v666 = vpop.xlane.xlu0 %665
        %v667 = vsel %vm663, %v662, -inf
        %668 = vmax.xlane.f32.xlu0 %v667
        %v669 = vpop.xlane.xlu0 %668
        %v670 = vsub.f32 %v661, %v666
        %v671 = vsub.f32 %v662, %v669
        %v672 = vmul.f32 %v670, 1.442695
        %v673 = vpow.pop %v672
        %v674 = vmul.f32 %v671, 1.442695
        %v675 = vpow.pop %v674
        %v676 = vsel %vm663, %v673, 0.0
        %677 = vadd.xlane.f32.xlu0 %v676
        %v678 = vpop.xlane.xlu0 %677
        %v679 = vsel %vm663, %v675, 0.0
        %680 = vadd.xlane.f32.xlu0 %v679
        %v681 = vpop.xlane.xlu0 %680
        %v682 = vrcp.pop %v678
        %v683 = vrcp.pop %v681
        %v684 = vmul.f32 %v678, %v682
        %v685 = vmul.f32 %v681, %v683
        %v686 = vsub.f32 2.0, %v684
        %v687 = vsub.f32 2.0, %v685
        %v688 = vmul.f32 %v682, %v686
        %v689 = vmul.f32 %v683, %v687
        %690 = vrot.lane.b32.xlu0 %v498, 96
        %v691 = vpop.permute.xlu0 %690
        %692 = vrot.lane.b32.xlu0 %v499, 96
        %v693 = vpop.permute.xlu0 %692
        %v697 = vsel %vm663, %v673, 0
        %699 = vmatprep.subr.mxu0 0.0
        %700 = vmatpush1.msra.mxu0 %v691
        %701 = vmatprep.subr.mxu0 0.0
        %702 = vmatpush1.msra.mxu0 %v693
        %703 = vmatprep.subr.mxu0 0.0
        %704 = vmatpush1.msra.mxu0 0.0
        %705 = vmatprep.subr.mxu0 0.0
        %706 = vmatpush1.msra.mxu0 0.0
        %707 = vmatprep.subr.mxu0 0.0
        %708 = vmatpush1.msra.mxu0 0.0
        %709 = vmatprep.subr.mxu0 0.0
        %710 = vmatpush1.msra.mxu0 0.0
        %711 = vmatprep.subr.mxu0 0.0
        %712 = vmatpush1.msra.mxu0 0.0
        %713 = vmatprep.subr.mxu0 0.0
        %714 = vmatpush1.msra.mxu0 0.0
        %715 = vmatprep.subr.mxu0 0.0
        %716 = vmatpush1.msra.mxu0 0.0
        %717 = vmatprep.subr.mxu0 0.0
        %718 = vmatpush1.msra.mxu0 0.0
        %719 = vmatprep.subr.mxu0 0.0
        %720 = vmatpush1.msra.mxu0 0.0
        %721 = vmatprep.subr.mxu0 0.0
        %722 = vmatpush1.msra.mxu0 0.0
        %723 = vmatprep.subr.mxu0 0.0
        %724 = vmatpush1.msra.mxu0 0.0
        %725 = vmatprep.subr.mxu0 0.0
        %726 = vmatpush1.msra.mxu0 0.0
        %727 = vmatprep.subr.mxu0 0.0
        %728 = vmatpush1.msra.mxu0 0.0
        %729 = vmatprep.subr.mxu0 0.0
        %730 = vmatpush1.msra.mxu0 0.0
        %731 = vmatprep.subr.mxu0 0.0
        %732 = vmatpush1.msra.mxu0 0.0
        %733 = vmatprep.subr.mxu0 0.0
        %734 = vmatpush1.msra.mxu0 0.0
        %735 = vmatprep.subr.mxu0 0.0
        %736 = vmatpush1.msra.mxu0 0.0
        %737 = vmatprep.subr.mxu0 0.0
        %738 = vmatpush1.msra.mxu0 0.0
        %739 = vmatprep.subr.mxu0 0.0
        %740 = vmatpush1.msra.mxu0 0.0
        %741 = vmatprep.subr.mxu0 0.0
        %742 = vmatpush1.msra.mxu0 0.0
        %743 = vmatprep.subr.mxu0 0.0
        %744 = vmatpush1.msra.mxu0 0.0
        %745 = vmatprep.subr.mxu0 0.0
        %746 = vmatpush1.msra.mxu0 0.0
        %747 = vmatprep.subr.mxu0 0.0
        %748 = vmatpush1.msra.mxu0 0.0
        %749 = vmatprep.subr.mxu0 0.0
        %750 = vmatpush1.msra.mxu0 0.0
        %751 = vmatprep.subr.mxu0 0.0
        %752 = vmatpush1.msra.mxu0 0.0
        %753 = vmatprep.subr.mxu0 0.0
        %754 = vmatpush1.msra.mxu0 0.0
        %755 = vmatprep.subr.mxu0 0.0
        %756 = vmatpush1.msra.mxu0 0.0
        %757 = vmatprep.subr.mxu0 0.0
        %758 = vmatpush1.msra.mxu0 0.0
        %759 = vmatprep.subr.mxu0 0.0
        %760 = vmatpush1.msra.mxu0 0.0
        %761 = vmatprep.subr.mxu0 0.0
        %762 = vmatpush1.msra.mxu0 0.0
        %763 = vmatprep.mubr.f32.mxu0 0.0
        %764 = vmatmul.mubr.f32.gmra.mrb[0].mxu0 %v697
        %v765 = vpop.f32.mrb[0].mxu0
        %v766 = vadd.f32 0.0, %v765
        %v767 = vpop.f32.mrb[0].mxu0
        %768 = vdwg.mxu0
        %769 = vrot.lane.b32.xlu0 %v500, 96
        %v770 = vpop.permute.xlu0 %769
        %771 = vrot.lane.b32.xlu0 %v501, 96
        %v772 = vpop.permute.xlu0 %771
        %v776 = vsel %vm663, %v675, 0
        %778 = vmatprep.subr.mxu0 0.0
        %779 = vmatpush1.msra.mxu0 %v770
        %780 = vmatprep.subr.mxu0 0.0
        %781 = vmatpush1.msra.mxu0 %v772
        %782 = vmatprep.subr.mxu0 0.0
        %783 = vmatpush1.msra.mxu0 0.0
        %784 = vmatprep.subr.mxu0 0.0
        %785 = vmatpush1.msra.mxu0 0.0
        %786 = vmatprep.subr.mxu0 0.0
        %787 = vmatpush1.msra.mxu0 0.0
        %788 = vmatprep.subr.mxu0 0.0
        %789 = vmatpush1.msra.mxu0 0.0
        %790 = vmatprep.subr.mxu0 0.0
        %791 = vmatpush1.msra.mxu0 0.0
        %792 = vmatprep.subr.mxu0 0.0
        %793 = vmatpush1.msra.mxu0 0.0
        %794 = vmatprep.subr.mxu0 0.0
        %795 = vmatpush1.msra.mxu0 0.0
        %796 = vmatprep.subr.mxu0 0.0
        %797 = vmatpush1.msra.mxu0 0.0
        %798 = vmatprep.subr.mxu0 0.0
        %799 = vmatpush1.msra.mxu0 0.0
        %800 = vmatprep.subr.mxu0 0.0
        %801 = vmatpush1.msra.mxu0 0.0
        %802 = vmatprep.subr.mxu0 0.0
        %803 = vmatpush1.msra.mxu0 0.0
        %804 = vmatprep.subr.mxu0 0.0
        %805 = vmatpush1.msra.mxu0 0.0
        %806 = vmatprep.subr.mxu0 0.0
        %807 = vmatpush1.msra.mxu0 0.0
        %808 = vmatprep.subr.mxu0 0.0
        %809 = vmatpush1.msra.mxu0 0.0
        %810 = vmatprep.subr.mxu0 0.0
        %811 = vmatpush1.msra.mxu0 0.0
        %812 = vmatprep.subr.mxu0 0.0
        %813 = vmatpush1.msra.mxu0 0.0
        %814 = vmatprep.subr.mxu0 0.0
        %815 = vmatpush1.msra.mxu0 0.0
        %816 = vmatprep.subr.mxu0 0.0
        %817 = vmatpush1.msra.mxu0 0.0
        %818 = vmatprep.subr.mxu0 0.0
        %819 = vmatpush1.msra.mxu0 0.0
        %820 = vmatprep.subr.mxu0 0.0
        %821 = vmatpush1.msra.mxu0 0.0
        %822 = vmatprep.subr.mxu0 0.0
        %823 = vmatpush1.msra.mxu0 0.0
        %824 = vmatprep.subr.mxu0 0.0
        %825 = vmatpush1.msra.mxu0 0.0
        %826 = vmatprep.subr.mxu0 0.0
        %827 = vmatpush1.msra.mxu0 0.0
        %828 = vmatprep.subr.mxu0 0.0
        %829 = vmatpush1.msra.mxu0 0.0
        %830 = vmatprep.subr.mxu0 0.0
        %831 = vmatpush1.msra.mxu0 0.0
        %832 = vmatprep.subr.mxu0 0.0
        %833 = vmatpush1.msra.mxu0 0.0
        %834 = vmatprep.subr.mxu0 0.0
        %835 = vmatpush1.msra.mxu0 0.0
        %836 = vmatprep.subr.mxu0 0.0
        %837 = vmatpush1.msra.mxu0 0.0
        %838 = vmatprep.subr.mxu0 0.0
        %839 = vmatpush1.msra.mxu0 0.0
        %840 = vmatprep.subr.mxu0 0.0
        %841 = vmatpush1.msra.mxu0 0.0
        %842 = vmatprep.mubr.f32.mxu0 0.0
        %843 = vmatmul.mubr.f32.gmra.mrb[0].mxu0 %v776
        %v844 = vpop.f32.mrb[0].mxu0
        %v845 = vadd.f32 0.0, %v844
        %v846 = vpop.f32.mrb[0].mxu0
        %847 = vdwg.mxu0
        %v848 = vmul.f32 %v766, %v688
        %v849 = vmul.f32 %v845, %v689
        %850 = vst.msk [vmem:[#allocation4] sm:$0xff] %vm502, %v848
        %851 = vst.msk [vmem:[#allocation4 + $0x8] sm:$0xff] %vm502, %v849
        %v852 = vld [vmem:[#allocation2] sm:$0xff]
        %v853 = vld [vmem:[#allocation2 + $0x8] sm:$0xff]
        %v854 = vld [vmem:[#allocation3] sm:$0xff]
        %v855 = vld [vmem:[#allocation3 + $0x8] sm:$0xff]
        %v856 = vld [vmem:[#allocation3 + $0x10] sm:$0xff]
        %v857 = vld [vmem:[#allocation3 + $0x18] sm:$0xff]
        %859 = vrot.lane.b32.xlu0 %v852, 120
        %v860 = vpop.permute.xlu0 %859
        %863 = vrot.lane.b32.xlu0 %v854, 120
        %v864 = vpop.permute.xlu0 %863
        %865 = vrot.lane.b32.xlu0 %v855, 120
        %v866 = vpop.permute.xlu0 %865
        %v867 = vsel %vm502, %v860, 0
        %v869 = vsel %vm502, %v864, 0
        %v871 = vsel %vm502, %v866, 0
        %873 = vmatprep.subr.mxu0 0.0
        %874 = vmatpush1.xpose.msra.mxu0 %v869
        %875 = vmatprep.subr.mxu0 0.0
        %876 = vmatpush1.xpose.msra.mxu0 %v871
        %877 = vmatprep.subr.mxu0 0.0
        %878 = vmatpush1.xpose.msra.mxu0 0.0
        %879 = vmatprep.subr.mxu0 0.0
        %880 = vmatpush1.xpose.msra.mxu0 0.0
        %881 = vmatprep.subr.mxu0 0.0
        %882 = vmatpush1.xpose.msra.mxu0 0.0
        %883 = vmatprep.subr.mxu0 0.0
        %884 = vmatpush1.xpose.msra.mxu0 0.0
        %885 = vmatprep.subr.mxu0 0.0
        %886 = vmatpush1.xpose.msra.mxu0 0.0
        %887 = vmatprep.subr.mxu0 0.0
        %888 = vmatpush1.xpose.msra.mxu0 0.0
        %889 = vmatprep.subr.mxu0 0.0
        %890 = vmatpush1.xpose.msra.mxu0 0.0
        %891 = vmatprep.subr.mxu0 0.0
        %892 = vmatpush1.xpose.msra.mxu0 0.0
        %893 = vmatprep.subr.mxu0 0.0
        %894 = vmatpush1.xpose.msra.mxu0 0.0
        %895 = vmatprep.subr.mxu0 0.0
        %896 = vmatpush1.xpose.msra.mxu0 0.0
        %897 = vmatprep.subr.mxu0 0.0
        %898 = vmatpush1.xpose.msra.mxu0 0.0
        %899 = vmatprep.subr.mxu0 0.0
        %900 = vmatpush1.xpose.msra.mxu0 0.0
        %901 = vmatprep.subr.mxu0 0.0
        %902 = vmatpush1.xpose.msra.mxu0 0.0
        %903 = vmatprep.subr.mxu0 0.0
        %904 = vmatpush1.xpose.msra.mxu0 0.0
        %905 = vmatprep.subr.mxu0 0.0
        %906 = vmatpush1.xpose.msra.mxu0 0.0
        %907 = vmatprep.subr.mxu0 0.0
        %908 = vmatpush1.xpose.msra.mxu0 0.0
        %909 = vmatprep.subr.mxu0 0.0
        %910 = vmatpush1.xpose.msra.mxu0 0.0
        %911 = vmatprep.subr.mxu0 0.0
        %912 = vmatpush1.xpose.msra.mxu0 0.0
        %913 = vmatprep.subr.mxu0 0.0
        %914 = vmatpush1.xpose.msra.mxu0 0.0
        %915 = vmatprep.subr.mxu0 0.0
        %916 = vmatpush1.xpose.msra.mxu0 0.0
        %917 = vmatprep.subr.mxu0 0.0
        %918 = vmatpush1.xpose.msra.mxu0 0.0
        %919 = vmatprep.subr.mxu0 0.0
        %920 = vmatpush1.xpose.msra.mxu0 0.0
        %921 = vmatprep.subr.mxu0 0.0
        %922 = vmatpush1.xpose.msra.mxu0 0.0
        %923 = vmatprep.subr.mxu0 0.0
        %924 = vmatpush1.xpose.msra.mxu0 0.0
        %925 = vmatprep.subr.mxu0 0.0
        %926 = vmatpush1.xpose.msra.mxu0 0.0
        %927 = vmatprep.subr.mxu0 0.0
        %928 = vmatpush1.xpose.msra.mxu0 0.0
        %929 = vmatprep.subr.mxu0 0.0
        %930 = vmatpush1.xpose.msra.mxu0 0.0
        %931 = vmatprep.subr.mxu0 0.0
        %932 = vmatpush1.xpose.msra.mxu0 0.0
        %933 = vmatprep.subr.mxu0 0.0
        %934 = vmatpush1.xpose.msra.mxu0 0.0
        %935 = vmatprep.subr.mxu0 0.0
        %936 = vmatpush1.xpose.msra.mxu0 0.0
        %937 = vmatprep.mubr.f32.mxu0 0.0
        %938 = vmatmul.mubr.f32.gmra.mrb[0].mxu0 %v867
        %v939 = vpop.f32.mrb[0].mxu0
        %v940 = vadd.f32 0.0, %v939
        %v941 = vpop.f32.mrb[0].mxu0
        %942 = vdwg.mxu0
        %944 = vrot.lane.b32.xlu0 %v853, 120
        %v945 = vpop.permute.xlu0 %944
        %948 = vrot.lane.b32.xlu0 %v856, 120
        %v949 = vpop.permute.xlu0 %948
        %950 = vrot.lane.b32.xlu0 %v857, 120
        %v951 = vpop.permute.xlu0 %950
        %v952 = vsel %vm502, %v945, 0
        %v954 = vsel %vm502, %v949, 0
        %v956 = vsel %vm502, %v951, 0
        %958 = vmatprep.subr.mxu0 0.0
        %959 = vmatpush1.xpose.msra.mxu0 %v954
        %960 = vmatprep.subr.mxu0 0.0
        %961 = vmatpush1.xpose.msra.mxu0 %v956
        %962 = vmatprep.subr.mxu0 0.0
        %963 = vmatpush1.xpose.msra.mxu0 0.0
        %964 = vmatprep.subr.mxu0 0.0
        %965 = vmatpush1.xpose.msra.mxu0 0.0
        %966 = vmatprep.subr.mxu0 0.0
        %967 = vmatpush1.xpose.msra.mxu0 0.0
        %968 = vmatprep.subr.mxu0 0.0
        %969 = vmatpush1.xpose.msra.mxu0 0.0
        %970 = vmatprep.subr.mxu0 0.0
        %971 = vmatpush1.xpose.msra.mxu0 0.0
        %972 = vmatprep.subr.mxu0 0.0
        %973 = vmatpush1.xpose.msra.mxu0 0.0
        %974 = vmatprep.subr.mxu0 0.0
        %975 = vmatpush1.xpose.msra.mxu0 0.0
        %976 = vmatprep.subr.mxu0 0.0
        %977 = vmatpush1.xpose.msra.mxu0 0.0
        %978 = vmatprep.subr.mxu0 0.0
        %979 = vmatpush1.xpose.msra.mxu0 0.0
        %980 = vmatprep.subr.mxu0 0.0
        %981 = vmatpush1.xpose.msra.mxu0 0.0
        %982 = vmatprep.subr.mxu0 0.0
        %983 = vmatpush1.xpose.msra.mxu0 0.0
        %984 = vmatprep.subr.mxu0 0.0
        %985 = vmatpush1.xpose.msra.mxu0 0.0
        %986 = vmatprep.subr.mxu0 0.0
        %987 = vmatpush1.xpose.msra.mxu0 0.0
        %988 = vmatprep.subr.mxu0 0.0
        %989 = vmatpush1.xpose.msra.mxu0 0.0
        %990 = vmatprep.subr.mxu0 0.0
        %991 = vmatpush1.xpose.msra.mxu0 0.0
        %992 = vmatprep.subr.mxu0 0.0
        %993 = vmatpush1.xpose.msra.mxu0 0.0
        %994 = vmatprep.subr.mxu0 0.0
        %995 = vmatpush1.xpose.msra.mxu0 0.0
        %996 = vmatprep.subr.mxu0 0.0
        %997 = vmatpush1.xpose.msra.mxu0 0.0
        %998 = vmatprep.subr.mxu0 0.0
        %999 = vmatpush1.xpose.msra.mxu0 0.0
        %1000 = vmatprep.subr.mxu0 0.0
        %1001 = vmatpush1.xpose.msra.mxu0 0.0
        %1002 = vmatprep.subr.mxu0 0.0
        %1003 = vmatpush1.xpose.msra.mxu0 0.0
        %1004 = vmatprep.subr.mxu0 0.0
        %1005 = vmatpush1.xpose.msra.mxu0 0.0
        %1006 = vmatprep.subr.mxu0 0.0
        %1007 = vmatpush1.xpose.msra.mxu0 0.0
        %1008 = vmatprep.subr.mxu0 0.0
        %1009 = vmatpush1.xpose.msra.mxu0 0.0
        %1010 = vmatprep.subr.mxu0 0.0
        %1011 = vmatpush1.xpose.msra.mxu0 0.0
        %1012 = vmatprep.subr.mxu0 0.0
        %1013 = vmatpush1.xpose.msra.mxu0 0.0
        %1014 = vmatprep.subr.mxu0 0.0
        %1015 = vmatpush1.xpose.msra.mxu0 0.0
        %1016 = vmatprep.subr.mxu0 0.0
        %1017 = vmatpush1.xpose.msra.mxu0 0.0
        %1018 = vmatprep.subr.mxu0 0.0
        %1019 = vmatpush1.xpose.msra.mxu0 0.0
        %1020 = vmatprep.subr.mxu0 0.0
        %1021 = vmatpush1.xpose.msra.mxu0 0.0
        %1022 = vmatprep.mubr.f32.mxu0 0.0
        %1023 = vmatmul.mubr.f32.gmra.mrb[0].mxu0 %v952
        %v1024 = vpop.f32.mrb[0].mxu0
        %v1025 = vadd.f32 0.0, %v1024
        %v1026 = vpop.f32.mrb[0].mxu0
        %1027 = vdwg.mxu0
        %v1028 = vsel %vm495, %v940, -1e+30
        %v1029 = vsel %vm495, %v1025, -1e+30
        %v1030 = vsel %vm663, %v1028, -inf
        %1031 = vmax.xlane.f32.xlu0 %v1030
        %v1032 = vpop.xlane.xlu0 %1031
        %v1033 = vsel %vm663, %v1029, -inf
        %1034 = vmax.xlane.f32.xlu0 %v1033
        %v1035 = vpop.xlane.xlu0 %1034
        %v1036 = vsub.f32 %v1028, %v1032
        %v1037 = vsub.f32 %v1029, %v1035
        %v1038 = vmul.f32 %v1036, 1.442695
        %v1039 = vpow.pop %v1038
        %v1040 = vmul.f32 %v1037, 1.442695
        %v1041 = vpow.pop %v1040
        %v1042 = vsel %vm663, %v1039, 0.0
        %1043 = vadd.xlane.f32.xlu0 %v1042
        %v1044 = vpop.xlane.xlu0 %1043
        %v1045 = vsel %vm663, %v1041, 0.0
        %1046 = vadd.xlane.f32.xlu0 %v1045
        %v1047 = vpop.xlane.xlu0 %1046
        %v1048 = vrcp.pop %v1044
        %v1049 = vrcp.pop %v1047
        %v1050 = vmul.f32 %v1044, %v1048
        %v1051 = vmul.f32 %v1047, %v1049
        %v1052 = vsub.f32 2.0, %v1050
        %v1053 = vsub.f32 2.0, %v1051
        %v1054 = vmul.f32 %v1048, %v1052
        %v1055 = vmul.f32 %v1049, %v1053
        %1056 = vrot.lane.b32.xlu0 %v854, 88
        %v1057 = vpop.permute.xlu0 %1056
        %1058 = vrot.lane.b32.xlu0 %v855, 88
        %v1059 = vpop.permute.xlu0 %1058
        %v1063 = vsel %vm663, %v1039, 0
        %1065 = vmatprep.subr.mxu0 0.0
        %1066 = vmatpush1.msra.mxu0 %v1057
        %1067 = vmatprep.subr.mxu0 0.0
        %1068 = vmatpush1.msra.mxu0 %v1059
        %1069 = vmatprep.subr.mxu0 0.0
        %1070 = vmatpush1.msra.mxu0 0.0
        %1071 = vmatprep.subr.mxu0 0.0
        %1072 = vmatpush1.msra.mxu0 0.0
        %1073 = vmatprep.subr.mxu0 0.0
        %1074 = vmatpush1.msra.mxu0 0.0
        %1075 = vmatprep.subr.mxu0 0.0
        %1076 = vmatpush1.msra.mxu0 0.0
        %1077 = vmatprep.subr.mxu0 0.0
        %1078 = vmatpush1.msra.mxu0 0.0
        %1079 = vmatprep.subr.mxu0 0.0
        %1080 = vmatpush1.msra.mxu0 0.0
        %1081 = vmatprep.subr.mxu0 0.0
        %1082 = vmatpush1.msra.mxu0 0.0
        %1083 = vmatprep.subr.mxu0 0.0
        %1084 = vmatpush1.msra.mxu0 0.0
        %1085 = vmatprep.subr.mxu0 0.0
        %1086 = vmatpush1.msra.mxu0 0.0
        %1087 = vmatprep.subr.mxu0 0.0
        %1088 = vmatpush1.msra.mxu0 0.0
        %1089 = vmatprep.subr.mxu0 0.0
        %1090 = vmatpush1.msra.mxu0 0.0
        %1091 = vmatprep.subr.mxu0 0.0
        %1092 = vmatpush1.msra.mxu0 0.0
        %1093 = vmatprep.subr.mxu0 0.0
        %1094 = vmatpush1.msra.mxu0 0.0
        %1095 = vmatprep.subr.mxu0 0.0
        %1096 = vmatpush1.msra.mxu0 0.0
        %1097 = vmatprep.subr.mxu0 0.0
        %1098 = vmatpush1.msra.mxu0 0.0
        %1099 = vmatprep.subr.mxu0 0.0
        %1100 = vmatpush1.msra.mxu0 0.0
        %1101 = vmatprep.subr.mxu0 0.0
        %1102 = vmatpush1.msra.mxu0 0.0
        %1103 = vmatprep.subr.mxu0 0.0
        %1104 = vmatpush1.msra.mxu0 0.0
        %1105 = vmatprep.subr.mxu0 0.0
        %1106 = vmatpush1.msra.mxu0 0.0
        %1107 = vmatprep.subr.mxu0 0.0
        %1108 = vmatpush1.msra.mxu0 0.0
        %1109 = vmatprep.subr.mxu0 0.0
        %1110 = vmatpush1.msra.mxu0 0.0
        %1111 = vmatprep.subr.mxu0 0.0
        %1112 = vmatpush1.msra.mxu0 0.0
        %1113 = vmatprep.subr.mxu0 0.0
        %1114 = vmatpush1.msra.mxu0 0.0
        %1115 = vmatprep.subr.mxu0 0.0
        %1116 = vmatpush1.msra.mxu0 0.0
        %1117 = vmatprep.subr.mxu0 0.0
        %1118 = vmatpush1.msra.mxu0 0.0
        %1119 = vmatprep.subr.mxu0 0.0
        %1120 = vmatpush1.msra.mxu0 0.0
        %1121 = vmatprep.subr.mxu0 0.0
        %1122 = vmatpush1.msra.mxu0 0.0
        %1123 = vmatprep.subr.mxu0 0.0
        %1124 = vmatpush1.msra.mxu0 0.0
        %1125 = vmatprep.subr.mxu0 0.0
        %1126 = vmatpush1.msra.mxu0 0.0
        %1127 = vmatprep.subr.mxu0 0.0
        %1128 = vmatpush1.msra.mxu0 0.0
        %1129 = vmatprep.mubr.f32.mxu0 0.0
        %1130 = vmatmul.mubr.f32.gmra.mrb[0].mxu0 %v1063
        %v1131 = vpop.f32.mrb[0].mxu0
        %v1132 = vadd.f32 0.0, %v1131
        %v1133 = vpop.f32.mrb[0].mxu0
        %1134 = vdwg.mxu0
        %1135 = vrot.lane.b32.xlu0 %v856, 88
        %v1136 = vpop.permute.xlu0 %1135
        %1137 = vrot.lane.b32.xlu0 %v857, 88
        %v1138 = vpop.permute.xlu0 %1137
        %v1142 = vsel %vm663, %v1041, 0
        %1144 = vmatprep.subr.mxu0 0.0
        %1145 = vmatpush1.msra.mxu0 %v1136
        %1146 = vmatprep.subr.mxu0 0.0
        %1147 = vmatpush1.msra.mxu0 %v1138
        %1148 = vmatprep.subr.mxu0 0.0
        %1149 = vmatpush1.msra.mxu0 0.0
        %1150 = vmatprep.subr.mxu0 0.0
        %1151 = vmatpush1.msra.mxu0 0.0
        %1152 = vmatprep.subr.mxu0 0.0
        %1153 = vmatpush1.msra.mxu0 0.0
        %1154 = vmatprep.subr.mxu0 0.0
        %1155 = vmatpush1.msra.mxu0 0.0
        %1156 = vmatprep.subr.mxu0 0.0
        %1157 = vmatpush1.msra.mxu0 0.0
        %1158 = vmatprep.subr.mxu0 0.0
        %1159 = vmatpush1.msra.mxu0 0.0
        %1160 = vmatprep.subr.mxu0 0.0
        %1161 = vmatpush1.msra.mxu0 0.0
        %1162 = vmatprep.subr.mxu0 0.0
        %1163 = vmatpush1.msra.mxu0 0.0
        %1164 = vmatprep.subr.mxu0 0.0
        %1165 = vmatpush1.msra.mxu0 0.0
        %1166 = vmatprep.subr.mxu0 0.0
        %1167 = vmatpush1.msra.mxu0 0.0
        %1168 = vmatprep.subr.mxu0 0.0
        %1169 = vmatpush1.msra.mxu0 0.0
        %1170 = vmatprep.subr.mxu0 0.0
        %1171 = vmatpush1.msra.mxu0 0.0
        %1172 = vmatprep.subr.mxu0 0.0
        %1173 = vmatpush1.msra.mxu0 0.0
        %1174 = vmatprep.subr.mxu0 0.0
        %1175 = vmatpush1.msra.mxu0 0.0
        %1176 = vmatprep.subr.mxu0 0.0
        %1177 = vmatpush1.msra.mxu0 0.0
        %1178 = vmatprep.subr.mxu0 0.0
        %1179 = vmatpush1.msra.mxu0 0.0
        %1180 = vmatprep.subr.mxu0 0.0
        %1181 = vmatpush1.msra.mxu0 0.0
        %1182 = vmatprep.subr.mxu0 0.0
        %1183 = vmatpush1.msra.mxu0 0.0
        %1184 = vmatprep.subr.mxu0 0.0
        %1185 = vmatpush1.msra.mxu0 0.0
        %1186 = vmatprep.subr.mxu0 0.0
        %1187 = vmatpush1.msra.mxu0 0.0
        %1188 = vmatprep.subr.mxu0 0.0
        %1189 = vmatpush1.msra.mxu0 0.0
        %1190 = vmatprep.subr.mxu0 0.0
        %1191 = vmatpush1.msra.mxu0 0.0
        %1192 = vmatprep.subr.mxu0 0.0
        %1193 = vmatpush1.msra.mxu0 0.0
        %1194 = vmatprep.subr.mxu0 0.0
        %1195 = vmatpush1.msra.mxu0 0.0
        %1196 = vmatprep.subr.mxu0 0.0
        %1197 = vmatpush1.msra.mxu0 0.0
        %1198 = vmatprep.subr.mxu0 0.0
        %1199 = vmatpush1.msra.mxu0 0.0
        %1200 = vmatprep.subr.mxu0 0.0
        %1201 = vmatpush1.msra.mxu0 0.0
        %1202 = vmatprep.subr.mxu0 0.0
        %1203 = vmatpush1.msra.mxu0 0.0
        %1204 = vmatprep.subr.mxu0 0.0
        %1205 = vmatpush1.msra.mxu0 0.0
        %1206 = vmatprep.subr.mxu0 0.0
        %1207 = vmatpush1.msra.mxu0 0.0
        %1208 = vmatprep.mubr.f32.mxu0 0.0
        %1209 = vmatmul.mubr.f32.gmra.mrb[0].mxu0 %v1142
        %v1210 = vpop.f32.mrb[0].mxu0
        %v1211 = vadd.f32 0.0, %v1210
        %v1212 = vpop.f32.mrb[0].mxu0
        %1213 = vdwg.mxu0
        %v1214 = vmul.f32 %v1132, %v1054
        %v1215 = vmul.f32 %v1211, %v1055
        %1218 = vrot.lane.b32.xlu0 %v1214, 8
        %v1219 = vpop.permute.xlu0 %1218
        %1220 = vrot.lane.b32.xlu0 %v1215, 8
        %v1221 = vpop.permute.xlu0 %1220
        %vm1224 = vcmask 130112
        %1225 = vst.msk [vmem:[#allocation4] sm:$0xff] %vm1224, %v1219
        %1226 = vst.msk [vmem:[#allocation4 + $0x8] sm:$0xff] %vm1224, %v1221
        %v1227 = vld [vmem:[#allocation2] sm:$0xff]
        %v1228 = vld [vmem:[#allocation2 + $0x8] sm:$0xff]
        %v1229 = vld [vmem:[#allocation3] sm:$0xff]
        %v1230 = vld [vmem:[#allocation3 + $0x8] sm:$0xff]
        %v1231 = vld [vmem:[#allocation3 + $0x10] sm:$0xff]
        %v1232 = vld [vmem:[#allocation3 + $0x18] sm:$0xff]
        %1234 = vrot.lane.b32.xlu0 %v1227, 112
        %v1235 = vpop.permute.xlu0 %1234
        %1238 = vrot.lane.b32.xlu0 %v1229, 112
        %v1239 = vpop.permute.xlu0 %1238
        %1240 = vrot.lane.b32.xlu0 %v1230, 112
        %v1241 = vpop.permute.xlu0 %1240
        %v1242 = vsel %vm502, %v1235, 0
        %v1244 = vsel %vm502, %v1239, 0
        %v1246 = vsel %vm502, %v1241, 0
        %1248 = vmatprep.subr.mxu0 0.0
        %1249 = vmatpush1.xpose.msra.mxu0 %v1244
        %1250 = vmatprep.subr.mxu0 0.0
        %1251 = vmatpush1.xpose.msra.mxu0 %v1246
        %1252 = vmatprep.subr.mxu0 0.0
        %1253 = vmatpush1.xpose.msra.mxu0 0.0
        %1254 = vmatprep.subr.mxu0 0.0
        %1255 = vmatpush1.xpose.msra.mxu0 0.0
        %1256 = vmatprep.subr.mxu0 0.0
        %1257 = vmatpush1.xpose.msra.mxu0 0.0
        %1258 = vmatprep.subr.mxu0 0.0
        %1259 = vmatpush1.xpose.msra.mxu0 0.0
        %1260 = vmatprep.subr.mxu0 0.0
        %1261 = vmatpush1.xpose.msra.mxu0 0.0
        %1262 = vmatprep.subr.mxu0 0.0
        %1263 = vmatpush1.xpose.msra.mxu0 0.0
        %1264 = vmatprep.subr.mxu0 0.0
        %1265 = vmatpush1.xpose.msra.mxu0 0.0
        %1266 = vmatprep.subr.mxu0 0.0
        %1267 = vmatpush1.xpose.msra.mxu0 0.0
        %1268 = vmatprep.subr.mxu0 0.0
        %1269 = vmatpush1.xpose.msra.mxu0 0.0
        %1270 = vmatprep.subr.mxu0 0.0
        %1271 = vmatpush1.xpose.msra.mxu0 0.0
        %1272 = vmatprep.subr.mxu0 0.0
        %1273 = vmatpush1.xpose.msra.mxu0 0.0
        %1274 = vmatprep.subr.mxu0 0.0
        %1275 = vmatpush1.xpose.msra.mxu0 0.0
        %1276 = vmatprep.subr.mxu0 0.0
        %1277 = vmatpush1.xpose.msra.mxu0 0.0
        %1278 = vmatprep.subr.mxu0 0.0
        %1279 = vmatpush1.xpose.msra.mxu0 0.0
        %1280 = vmatprep.subr.mxu0 0.0
        %1281 = vmatpush1.xpose.msra.mxu0 0.0
        %1282 = vmatprep.subr.mxu0 0.0
        %1283 = vmatpush1.xpose.msra.mxu0 0.0
        %1284 = vmatprep.subr.mxu0 0.0
        %1285 = vmatpush1.xpose.msra.mxu0 0.0
        %1286 = vmatprep.subr.mxu0 0.0
        %1287 = vmatpush1.xpose.msra.mxu0 0.0
        %1288 = vmatprep.subr.mxu0 0.0
        %1289 = vmatpush1.xpose.msra.mxu0 0.0
        %1290 = vmatprep.subr.mxu0 0.0
        %1291 = vmatpush1.xpose.msra.mxu0 0.0
        %1292 = vmatprep.subr.mxu0 0.0
        %1293 = vmatpush1.xpose.msra.mxu0 0.0
        %1294 = vmatprep.subr.mxu0 0.0
        %1295 = vmatpush1.xpose.msra.mxu0 0.0
        %1296 = vmatprep.subr.mxu0 0.0
        %1297 = vmatpush1.xpose.msra.mxu0 0.0
        %1298 = vmatprep.subr.mxu0 0.0
        %1299 = vmatpush1.xpose.msra.mxu0 0.0
        %1300 = vmatprep.subr.mxu0 0.0
        %1301 = vmatpush1.xpose.msra.mxu0 0.0
        %1302 = vmatprep.subr.mxu0 0.0
        %1303 = vmatpush1.xpose.msra.mxu0 0.0
        %1304 = vmatprep.subr.mxu0 0.0
        %1305 = vmatpush1.xpose.msra.mxu0 0.0
        %1306 = vmatprep.subr.mxu0 0.0
        %1307 = vmatpush1.xpose.msra.mxu0 0.0
        %1308 = vmatprep.subr.mxu0 0.0
        %1309 = vmatpush1.xpose.msra.mxu0 0.0
        %1310 = vmatprep.subr.mxu0 0.0
        %1311 = vmatpush1.xpose.msra.mxu0 0.0
        %1312 = vmatprep.mubr.f32.mxu0 0.0
        %1313 = vmatmul.mubr.f32.gmra.mrb[0].mxu0 %v1242
        %v1314 = vpop.f32.mrb[0].mxu0
        %v1315 = vadd.f32 0.0, %v1314
        %v1316 = vpop.f32.mrb[0].mxu0
        %1317 = vdwg.mxu0
        %1319 = vrot.lane.b32.xlu0 %v1228, 112
        %v1320 = vpop.permute.xlu0 %1319
        %1323 = vrot.lane.b32.xlu0 %v1231, 112
        %v1324 = vpop.permute.xlu0 %1323
        %1325 = vrot.lane.b32.xlu0 %v1232, 112
        %v1326 = vpop.permute.xlu0 %1325
        %v1327 = vsel %vm502, %v1320, 0
        %v1329 = vsel %vm502, %v1324, 0
        %v1331 = vsel %vm502, %v1326, 0
        %1333 = vmatprep.subr.mxu0 0.0
        %1334 = vmatpush1.xpose.msra.mxu0 %v1329
        %1335 = vmatprep.subr.mxu0 0.0
        %1336 = vmatpush1.xpose.msra.mxu0 %v1331
        %1337 = vmatprep.subr.mxu0 0.0
        %1338 = vmatpush1.xpose.msra.mxu0 0.0
        %1339 = vmatprep.subr.mxu0 0.0
        %1340 = vmatpush1.xpose.msra.mxu0 0.0
        %1341 = vmatprep.subr.mxu0 0.0
        %1342 = vmatpush1.xpose.msra.mxu0 0.0
        %1343 = vmatprep.subr.mxu0 0.0
        %1344 = vmatpush1.xpose.msra.mxu0 0.0
        %1345 = vmatprep.subr.mxu0 0.0
        %1346 = vmatpush1.xpose.msra.mxu0 0.0
        %1347 = vmatprep.subr.mxu0 0.0
        %1348 = vmatpush1.xpose.msra.mxu0 0.0
        %1349 = vmatprep.subr.mxu0 0.0
        %1350 = vmatpush1.xpose.msra.mxu0 0.0
        %1351 = vmatprep.subr.mxu0 0.0
        %1352 = vmatpush1.xpose.msra.mxu0 0.0
        %1353 = vmatprep.subr.mxu0 0.0
        %1354 = vmatpush1.xpose.msra.mxu0 0.0
        %1355 = vmatprep.subr.mxu0 0.0
        %1356 = vmatpush1.xpose.msra.mxu0 0.0
        %1357 = vmatprep.subr.mxu0 0.0
        %1358 = vmatpush1.xpose.msra.mxu0 0.0
        %1359 = vmatprep.subr.mxu0 0.0
        %1360 = vmatpush1.xpose.msra.mxu0 0.0
        %1361 = vmatprep.subr.mxu0 0.0
        %1362 = vmatpush1.xpose.msra.mxu0 0.0
        %1363 = vmatprep.subr.mxu0 0.0
        %1364 = vmatpush1.xpose.msra.mxu0 0.0
        %1365 = vmatprep.subr.mxu0 0.0
        %1366 = vmatpush1.xpose.msra.mxu0 0.0
        %1367 = vmatprep.subr.mxu0 0.0
        %1368 = vmatpush1.xpose.msra.mxu0 0.0
        %1369 = vmatprep.subr.mxu0 0.0
        %1370 = vmatpush1.xpose.msra.mxu0 0.0
        %1371 = vmatprep.subr.mxu0 0.0
        %1372 = vmatpush1.xpose.msra.mxu0 0.0
        %1373 = vmatprep.subr.mxu0 0.0
        %1374 = vmatpush1.xpose.msra.mxu0 0.0
        %1375 = vmatprep.subr.mxu0 0.0
        %1376 = vmatpush1.xpose.msra.mxu0 0.0
        %1377 = vmatprep.subr.mxu0 0.0
        %1378 = vmatpush1.xpose.msra.mxu0 0.0
        %1379 = vmatprep.subr.mxu0 0.0
        %1380 = vmatpush1.xpose.msra.mxu0 0.0
        %1381 = vmatprep.subr.mxu0 0.0
        %1382 = vmatpush1.xpose.msra.mxu0 0.0
        %1383 = vmatprep.subr.mxu0 0.0
        %1384 = vmatpush1.xpose.msra.mxu0 0.0
        %1385 = vmatprep.subr.mxu0 0.0
        %1386 = vmatpush1.xpose.msra.mxu0 0.0
        %1387 = vmatprep.subr.mxu0 0.0
        %1388 = vmatpush1.xpose.msra.mxu0 0.0
        %1389 = vmatprep.subr.mxu0 0.0
        %1390 = vmatpush1.xpose.msra.mxu0 0.0
        %1391 = vmatprep.subr.mxu0 0.0
        %1392 = vmatpush1.xpose.msra.mxu0 0.0
        %1393 = vmatprep.subr.mxu0 0.0
        %1394 = vmatpush1.xpose.msra.mxu0 0.0
        %1395 = vmatprep.subr.mxu0 0.0
        %1396 = vmatpush1.xpose.msra.mxu0 0.0
        %1397 = vmatprep.mubr.f32.mxu0 0.0
        %1398 = vmatmul.mubr.f32.gmra.mrb[0].mxu0 %v1327
        %v1399 = vpop.f32.mrb[0].mxu0
        %v1400 = vadd.f32 0.0, %v1399
        %v1401 = vpop.f32.mrb[0].mxu0
        %1402 = vdwg.mxu0
        %v1403 = vsel %vm495, %v1315, -1e+30
        %v1404 = vsel %vm495, %v1400, -1e+30
        %v1405 = vsel %vm663, %v1403, -inf
        %1406 = vmax.xlane.f32.xlu0 %v1405
        %v1407 = vpop.xlane.xlu0 %1406
        %v1408 = vsel %vm663, %v1404, -inf
        %1409 = vmax.xlane.f32.xlu0 %v1408
        %v1410 = vpop.xlane.xlu0 %1409
        %v1411 = vsub.f32 %v1403, %v1407
        %v1412 = vsub.f32 %v1404, %v1410
        %v1413 = vmul.f32 %v1411, 1.442695
        %v1414 = vpow.pop %v1413
        %v1415 = vmul.f32 %v1412, 1.442695
        %v1416 = vpow.pop %v1415
        %v1417 = vsel %vm663, %v1414, 0.0
        %1418 = vadd.xlane.f32.xlu0 %v1417
        %v1419 = vpop.xlane.xlu0 %1418
        %v1420 = vsel %vm663, %v1416, 0.0
        %1421 = vadd.xlane.f32.xlu0 %v1420
        %v1422 = vpop.xlane.xlu0 %1421
        %v1423 = vrcp.pop %v1419
        %v1424 = vrcp.pop %v1422
        %v1425 = vmul.f32 %v1419, %v1423
        %v1426 = vmul.f32 %v1422, %v1424
        %v1427 = vsub.f32 2.0, %v1425
        %v1428 = vsub.f32 2.0, %v1426
        %v1429 = vmul.f32 %v1423, %v1427
        %v1430 = vmul.f32 %v1424, %v1428
        %1431 = vrot.lane.b32.xlu0 %v1229, 80
        %v1432 = vpop.permute.xlu0 %1431
        %1433 = vrot.lane.b32.xlu0 %v1230, 80
        %v1434 = vpop.permute.xlu0 %1433
        %v1438 = vsel %vm663, %v1414, 0
        %1440 = vmatprep.subr.mxu0 0.0
        %1441 = vmatpush1.msra.mxu0 %v1432
        %1442 = vmatprep.subr.mxu0 0.0
        %1443 = vmatpush1.msra.mxu0 %v1434
        %1444 = vmatprep.subr.mxu0 0.0
        %1445 = vmatpush1.msra.mxu0 0.0
        %1446 = vmatprep.subr.mxu0 0.0
        %1447 = vmatpush1.msra.mxu0 0.0
        %1448 = vmatprep.subr.mxu0 0.0
        %1449 = vmatpush1.msra.mxu0 0.0
        %1450 = vmatprep.subr.mxu0 0.0
        %1451 = vmatpush1.msra.mxu0 0.0
        %1452 = vmatprep.subr.mxu0 0.0
        %1453 = vmatpush1.msra.mxu0 0.0
        %1454 = vmatprep.subr.mxu0 0.0
        %1455 = vmatpush1.msra.mxu0 0.0
        %1456 = vmatprep.subr.mxu0 0.0
        %1457 = vmatpush1.msra.mxu0 0.0
        %1458 = vmatprep.subr.mxu0 0.0
        %1459 = vmatpush1.msra.mxu0 0.0
        %1460 = vmatprep.subr.mxu0 0.0
        %1461 = vmatpush1.msra.mxu0 0.0
        %1462 = vmatprep.subr.mxu0 0.0
        %1463 = vmatpush1.msra.mxu0 0.0
        %1464 = vmatprep.subr.mxu0 0.0
        %1465 = vmatpush1.msra.mxu0 0.0
        %1466 = vmatprep.subr.mxu0 0.0
        %1467 = vmatpush1.msra.mxu0 0.0
        %1468 = vmatprep.subr.mxu0 0.0
        %1469 = vmatpush1.msra.mxu0 0.0
        %1470 = vmatprep.subr.mxu0 0.0
        %1471 = vmatpush1.msra.mxu0 0.0
        %1472 = vmatprep.subr.mxu0 0.0
        %1473 = vmatpush1.msra.mxu0 0.0
        %1474 = vmatprep.subr.mxu0 0.0
        %1475 = vmatpush1.msra.mxu0 0.0
        %1476 = vmatprep.subr.mxu0 0.0
        %1477 = vmatpush1.msra.mxu0 0.0
        %1478 = vmatprep.subr.mxu0 0.0
        %1479 = vmatpush1.msra.mxu0 0.0
        %1480 = vmatprep.subr.mxu0 0.0
        %1481 = vmatpush1.msra.mxu0 0.0
        %1482 = vmatprep.subr.mxu0 0.0
        %1483 = vmatpush1.msra.mxu0 0.0
        %1484 = vmatprep.subr.mxu0 0.0
        %1485 = vmatpush1.msra.mxu0 0.0
        %1486 = vmatprep.subr.mxu0 0.0
        %1487 = vmatpush1.msra.mxu0 0.0
        %1488 = vmatprep.subr.mxu0 0.0
        %1489 = vmatpush1.msra.mxu0 0.0
        %1490 = vmatprep.subr.mxu0 0.0
        %1491 = vmatpush1.msra.mxu0 0.0
        %1492 = vmatprep.subr.mxu0 0.0
        %1493 = vmatpush1.msra.mxu0 0.0
        %1494 = vmatprep.subr.mxu0 0.0
        %1495 = vmatpush1.msra.mxu0 0.0
        %1496 = vmatprep.subr.mxu0 0.0
        %1497 = vmatpush1.msra.mxu0 0.0
        %1498 = vmatprep.subr.mxu0 0.0
        %1499 = vmatpush1.msra.mxu0 0.0
        %1500 = vmatprep.subr.mxu0 0.0
        %1501 = vmatpush1.msra.mxu0 0.0
        %1502 = vmatprep.subr.mxu0 0.0
        %1503 = vmatpush1.msra.mxu0 0.0
        %1504 = vmatprep.mubr.f32.mxu0 0.0
        %1505 = vmatmul.mubr.f32.gmra.mrb[0].mxu0 %v1438
        %v1506 = vpop.f32.mrb[0].mxu0
        %v1507 = vadd.f32 0.0, %v1506
        %v1508 = vpop.f32.mrb[0].mxu0
        %1509 = vdwg.mxu0
        %1510 = vrot.lane.b32.xlu0 %v1231, 80
        %v1511 = vpop.permute.xlu0 %1510
        %1512 = vrot.lane.b32.xlu0 %v1232, 80
        %v1513 = vpop.permute.xlu0 %1512
        %v1517 = vsel %vm663, %v1416, 0
        %1519 = vmatprep.subr.mxu0 0.0
        %1520 = vmatpush1.msra.mxu0 %v1511
        %1521 = vmatprep.subr.mxu0 0.0
        %1522 = vmatpush1.msra.mxu0 %v1513
        %1523 = vmatprep.subr.mxu0 0.0
        %1524 = vmatpush1.msra.mxu0 0.0
        %1525 = vmatprep.subr.mxu0 0.0
        %1526 = vmatpush1.msra.mxu0 0.0
        %1527 = vmatprep.subr.mxu0 0.0
        %1528 = vmatpush1.msra.mxu0 0.0
        %1529 = vmatprep.subr.mxu0 0.0
        %1530 = vmatpush1.msra.mxu0 0.0
        %1531 = vmatprep.subr.mxu0 0.0
        %1532 = vmatpush1.msra.mxu0 0.0
        %1533 = vmatprep.subr.mxu0 0.0
        %1534 = vmatpush1.msra.mxu0 0.0
        %1535 = vmatprep.subr.mxu0 0.0
        %1536 = vmatpush1.msra.mxu0 0.0
        %1537 = vmatprep.subr.mxu0 0.0
        %1538 = vmatpush1.msra.mxu0 0.0
        %1539 = vmatprep.subr.mxu0 0.0
        %1540 = vmatpush1.msra.mxu0 0.0
        %1541 = vmatprep.subr.mxu0 0.0
        %1542 = vmatpush1.msra.mxu0 0.0
        %1543 = vmatprep.subr.mxu0 0.0
        %1544 = vmatpush1.msra.mxu0 0.0
        %1545 = vmatprep.subr.mxu0 0.0
        %1546 = vmatpush1.msra.mxu0 0.0
        %1547 = vmatprep.subr.mxu0 0.0
        %1548 = vmatpush1.msra.mxu0 0.0
        %1549 = vmatprep.subr.mxu0 0.0
        %1550 = vmatpush1.msra.mxu0 0.0
        %1551 = vmatprep.subr.mxu0 0.0
        %1552 = vmatpush1.msra.mxu0 0.0
        %1553 = vmatprep.subr.mxu0 0.0
        %1554 = vmatpush1.msra.mxu0 0.0
        %1555 = vmatprep.subr.mxu0 0.0
        %1556 = vmatpush1.msra.mxu0 0.0
        %1557 = vmatprep.subr.mxu0 0.0
        %1558 = vmatpush1.msra.mxu0 0.0
        %1559 = vmatprep.subr.mxu0 0.0
        %1560 = vmatpush1.msra.mxu0 0.0
        %1561 = vmatprep.subr.mxu0 0.0
        %1562 = vmatpush1.msra.mxu0 0.0
        %1563 = vmatprep.subr.mxu0 0.0
        %1564 = vmatpush1.msra.mxu0 0.0
        %1565 = vmatprep.subr.mxu0 0.0
        %1566 = vmatpush1.msra.mxu0 0.0
        %1567 = vmatprep.subr.mxu0 0.0
        %1568 = vmatpush1.msra.mxu0 0.0
        %1569 = vmatprep.subr.mxu0 0.0
        %1570 = vmatpush1.msra.mxu0 0.0
        %1571 = vmatprep.subr.mxu0 0.0
        %1572 = vmatpush1.msra.mxu0 0.0
        %1573 = vmatprep.subr.mxu0 0.0
        %1574 = vmatpush1.msra.mxu0 0.0
        %1575 = vmatprep.subr.mxu0 0.0
        %1576 = vmatpush1.msra.mxu0 0.0
        %1577 = vmatprep.subr.mxu0 0.0
        %1578 = vmatpush1.msra.mxu0 0.0
        %1579 = vmatprep.subr.mxu0 0.0
        %1580 = vmatpush1.msra.mxu0 0.0
        %1581 = vmatprep.subr.mxu0 0.0
        %1582 = vmatpush1.msra.mxu0 0.0
        %1583 = vmatprep.mubr.f32.mxu0 0.0
        %1584 = vmatmul.mubr.f32.gmra.mrb[0].mxu0 %v1517
        %v1585 = vpop.f32.mrb[0].mxu0
        %v1586 = vadd.f32 0.0, %v1585
        %v1587 = vpop.f32.mrb[0].mxu0
        %1588 = vdwg.mxu0
        %v1589 = vmul.f32 %v1507, %v1429
        %v1590 = vmul.f32 %v1586, %v1430
        %1593 = vrot.lane.b32.xlu0 %v1589, 16
        %v1594 = vpop.permute.xlu0 %1593
        %1595 = vrot.lane.b32.xlu0 %v1590, 16
        %v1596 = vpop.permute.xlu0 %1595
        %vm1599 = vcmask 195712
        %1600 = vst.msk [vmem:[#allocation4] sm:$0xff] %vm1599, %v1594
        %1601 = vst.msk [vmem:[#allocation4 + $0x8] sm:$0xff] %vm1599, %v1596
        %v1602 = vld [vmem:[#allocation2] sm:$0xff]
        %v1603 = vld [vmem:[#allocation2 + $0x8] sm:$0xff]
        %v1604 = vld [vmem:[#allocation3] sm:$0xff]
        %v1605 = vld [vmem:[#allocation3 + $0x8] sm:$0xff]
        %v1606 = vld [vmem:[#allocation3 + $0x10] sm:$0xff]
        %v1607 = vld [vmem:[#allocation3 + $0x18] sm:$0xff]
        %1609 = vrot.lane.b32.xlu0 %v1602, 104
        %v1610 = vpop.permute.xlu0 %1609
        %1613 = vrot.lane.b32.xlu0 %v1604, 104
        %v1614 = vpop.permute.xlu0 %1613
        %1615 = vrot.lane.b32.xlu0 %v1605, 104
        %v1616 = vpop.permute.xlu0 %1615
        %v1617 = vsel %vm502, %v1610, 0
        %v1619 = vsel %vm502, %v1614, 0
        %v1621 = vsel %vm502, %v1616, 0
        %1623 = vmatprep.subr.mxu0 0.0
        %1624 = vmatpush1.xpose.msra.mxu0 %v1619
        %1625 = vmatprep.subr.mxu0 0.0
        %1626 = vmatpush1.xpose.msra.mxu0 %v1621
        %1627 = vmatprep.subr.mxu0 0.0
        %1628 = vmatpush1.xpose.msra.mxu0 0.0
        %1629 = vmatprep.subr.mxu0 0.0
        %1630 = vmatpush1.xpose.msra.mxu0 0.0
        %1631 = vmatprep.subr.mxu0 0.0
        %1632 = vmatpush1.xpose.msra.mxu0 0.0
        %1633 = vmatprep.subr.mxu0 0.0
        %1634 = vmatpush1.xpose.msra.mxu0 0.0
        %1635 = vmatprep.subr.mxu0 0.0
        %1636 = vmatpush1.xpose.msra.mxu0 0.0
        %1637 = vmatprep.subr.mxu0 0.0
        %1638 = vmatpush1.xpose.msra.mxu0 0.0
        %1639 = vmatprep.subr.mxu0 0.0
        %1640 = vmatpush1.xpose.msra.mxu0 0.0
        %1641 = vmatprep.subr.mxu0 0.0
        %1642 = vmatpush1.xpose.msra.mxu0 0.0
        %1643 = vmatprep.subr.mxu0 0.0
        %1644 = vmatpush1.xpose.msra.mxu0 0.0
        %1645 = vmatprep.subr.mxu0 0.0
        %1646 = vmatpush1.xpose.msra.mxu0 0.0
        %1647 = vmatprep.subr.mxu0 0.0
        %1648 = vmatpush1.xpose.msra.mxu0 0.0
        %1649 = vmatprep.subr.mxu0 0.0
        %1650 = vmatpush1.xpose.msra.mxu0 0.0
        %1651 = vmatprep.subr.mxu0 0.0
        %1652 = vmatpush1.xpose.msra.mxu0 0.0
        %1653 = vmatprep.subr.mxu0 0.0
        %1654 = vmatpush1.xpose.msra.mxu0 0.0
        %1655 = vmatprep.subr.mxu0 0.0
        %1656 = vmatpush1.xpose.msra.mxu0 0.0
        %1657 = vmatprep.subr.mxu0 0.0
        %1658 = vmatpush1.xpose.msra.mxu0 0.0
        %1659 = vmatprep.subr.mxu0 0.0
        %1660 = vmatpush1.xpose.msra.mxu0 0.0
        %1661 = vmatprep.subr.mxu0 0.0
        %1662 = vmatpush1.xpose.msra.mxu0 0.0
        %1663 = vmatprep.subr.mxu0 0.0
        %1664 = vmatpush1.xpose.msra.mxu0 0.0
        %1665 = vmatprep.subr.mxu0 0.0
        %1666 = vmatpush1.xpose.msra.mxu0 0.0
        %1667 = vmatprep.subr.mxu0 0.0
        %1668 = vmatpush1.xpose.msra.mxu0 0.0
        %1669 = vmatprep.subr.mxu0 0.0
        %1670 = vmatpush1.xpose.msra.mxu0 0.0
        %1671 = vmatprep.subr.mxu0 0.0
        %1672 = vmatpush1.xpose.msra.mxu0 0.0
        %1673 = vmatprep.subr.mxu0 0.0
        %1674 = vmatpush1.xpose.msra.mxu0 0.0
        %1675 = vmatprep.subr.mxu0 0.0
        %1676 = vmatpush1.xpose.msra.mxu0 0.0
        %1677 = vmatprep.subr.mxu0 0.0
        %1678 = vmatpush1.xpose.msra.mxu0 0.0
        %1679 = vmatprep.subr.mxu0 0.0
        %1680 = vmatpush1.xpose.msra.mxu0 0.0
        %1681 = vmatprep.subr.mxu0 0.0
        %1682 = vmatpush1.xpose.msra.mxu0 0.0
        %1683 = vmatprep.subr.mxu0 0.0
        %1684 = vmatpush1.xpose.msra.mxu0 0.0
        %1685 = vmatprep.subr.mxu0 0.0
        %1686 = vmatpush1.xpose.msra.mxu0 0.0
        %1687 = vmatprep.mubr.f32.mxu0 0.0
        %1688 = vmatmul.mubr.f32.gmra.mrb[0].mxu0 %v1617
        %v1689 = vpop.f32.mrb[0].mxu0
        %v1690 = vadd.f32 0.0, %v1689
        %v1691 = vpop.f32.mrb[0].mxu0
        %1692 = vdwg.mxu0
        %1694 = vrot.lane.b32.xlu0 %v1603, 104
        %v1695 = vpop.permute.xlu0 %1694
        %1698 = vrot.lane.b32.xlu0 %v1606, 104
        %v1699 = vpop.permute.xlu0 %1698
        %1700 = vrot.lane.b32.xlu0 %v1607, 104
        %v1701 = vpop.permute.xlu0 %1700
        %v1702 = vsel %vm502, %v1695, 0
        %v1704 = vsel %vm502, %v1699, 0
        %v1706 = vsel %vm502, %v1701, 0
        %1708 = vmatprep.subr.mxu0 0.0
        %1709 = vmatpush1.xpose.msra.mxu0 %v1704
        %1710 = vmatprep.subr.mxu0 0.0
        %1711 = vmatpush1.xpose.msra.mxu0 %v1706
        %1712 = vmatprep.subr.mxu0 0.0
        %1713 = vmatpush1.xpose.msra.mxu0 0.0
        %1714 = vmatprep.subr.mxu0 0.0
        %1715 = vmatpush1.xpose.msra.mxu0 0.0
        %1716 = vmatprep.subr.mxu0 0.0
        %1717 = vmatpush1.xpose.msra.mxu0 0.0
        %1718 = vmatprep.subr.mxu0 0.0
        %1719 = vmatpush1.xpose.msra.mxu0 0.0
        %1720 = vmatprep.subr.mxu0 0.0
        %1721 = vmatpush1.xpose.msra.mxu0 0.0
        %1722 = vmatprep.subr.mxu0 0.0
        %1723 = vmatpush1.xpose.msra.mxu0 0.0
        %1724 = vmatprep.subr.mxu0 0.0
        %1725 = vmatpush1.xpose.msra.mxu0 0.0
        %1726 = vmatprep.subr.mxu0 0.0
        %1727 = vmatpush1.xpose.msra.mxu0 0.0
        %1728 = vmatprep.subr.mxu0 0.0
        %1729 = vmatpush1.xpose.msra.mxu0 0.0
        %1730 = vmatprep.subr.mxu0 0.0
        %1731 = vmatpush1.xpose.msra.mxu0 0.0
        %1732 = vmatprep.subr.mxu0 0.0
        %1733 = vmatpush1.xpose.msra.mxu0 0.0
        %1734 = vmatprep.subr.mxu0 0.0
        %1735 = vmatpush1.xpose.msra.mxu0 0.0
        %1736 = vmatprep.subr.mxu0 0.0
        %1737 = vmatpush1.xpose.msra.mxu0 0.0
        %1738 = vmatprep.subr.mxu0 0.0
        %1739 = vmatpush1.xpose.msra.mxu0 0.0
        %1740 = vmatprep.subr.mxu0 0.0
        %1741 = vmatpush1.xpose.msra.mxu0 0.0
        %1742 = vmatprep.subr.mxu0 0.0
        %1743 = vmatpush1.xpose.msra.mxu0 0.0
        %1744 = vmatprep.subr.mxu0 0.0
        %1745 = vmatpush1.xpose.msra.mxu0 0.0
        %1746 = vmatprep.subr.mxu0 0.0
        %1747 = vmatpush1.xpose.msra.mxu0 0.0
        %1748 = vmatprep.subr.mxu0 0.0
        %1749 = vmatpush1.xpose.msra.mxu0 0.0
        %1750 = vmatprep.subr.mxu0 0.0
        %1751 = vmatpush1.xpose.msra.mxu0 0.0
        %1752 = vmatprep.subr.mxu0 0.0
        %1753 = vmatpush1.xpose.msra.mxu0 0.0
        %1754 = vmatprep.subr.mxu0 0.0
        %1755 = vmatpush1.xpose.msra.mxu0 0.0
        %1756 = vmatprep.subr.mxu0 0.0
        %1757 = vmatpush1.xpose.msra.mxu0 0.0
        %1758 = vmatprep.subr.mxu0 0.0
        %1759 = vmatpush1.xpose.msra.mxu0 0.0
        %1760 = vmatprep.subr.mxu0 0.0
        %1761 = vmatpush1.xpose.msra.mxu0 0.0
        %1762 = vmatprep.subr.mxu0 0.0
        %1763 = vmatpush1.xpose.msra.mxu0 0.0
        %1764 = vmatprep.subr.mxu0 0.0
        %1765 = vmatpush1.xpose.msra.mxu0 0.0
        %1766 = vmatprep.subr.mxu0 0.0
        %1767 = vmatpush1.xpose.msra.mxu0 0.0
        %1768 = vmatprep.subr.mxu0 0.0
        %1769 = vmatpush1.xpose.msra.mxu0 0.0
        %1770 = vmatprep.subr.mxu0 0.0
        %1771 = vmatpush1.xpose.msra.mxu0 0.0
        %1772 = vmatprep.mubr.f32.mxu0 0.0
        %1773 = vmatmul.mubr.f32.gmra.mrb[0].mxu0 %v1702
        %v1774 = vpop.f32.mrb[0].mxu0
        %v1775 = vadd.f32 0.0, %v1774
        %v1776 = vpop.f32.mrb[0].mxu0
        %1777 = vdwg.mxu0
        %v1778 = vsel %vm495, %v1690, -1e+30
        %v1779 = vsel %vm495, %v1775, -1e+30
        %v1780 = vsel %vm663, %v1778, -inf
        %1781 = vmax.xlane.f32.xlu0 %v1780
        %v1782 = vpop.xlane.xlu0 %1781
        %v1783 = vsel %vm663, %v1779, -inf
        %1784 = vmax.xlane.f32.xlu0 %v1783
        %v1785 = vpop.xlane.xlu0 %1784
        %v1786 = vsub.f32 %v1778, %v1782
        %v1787 = vsub.f32 %v1779, %v1785
        %v1788 = vmul.f32 %v1786, 1.442695
        %v1789 = vpow.pop %v1788
        %v1790 = vmul.f32 %v1787, 1.442695
        %v1791 = vpow.pop %v1790
        %v1792 = vsel %vm663, %v1789, 0.0
        %1793 = vadd.xlane.f32.xlu0 %v1792
        %v1794 = vpop.xlane.xlu0 %1793
        %v1795 = vsel %vm663, %v1791, 0.0
        %1796 = vadd.xlane.f32.xlu0 %v1795
        %v1797 = vpop.xlane.xlu0 %1796
        %v1798 = vrcp.pop %v1794
        %v1799 = vrcp.pop %v1797
        %v1800 = vmul.f32 %v1794, %v1798
        %v1801 = vmul.f32 %v1797, %v1799
        %v1802 = vsub.f32 2.0, %v1800
        %v1803 = vsub.f32 2.0, %v1801
        %v1804 = vmul.f32 %v1798, %v1802
        %v1805 = vmul.f32 %v1799, %v1803
        %1806 = vrot.lane.b32.xlu0 %v1604, 72
        %v1807 = vpop.permute.xlu0 %1806
        %1808 = vrot.lane.b32.xlu0 %v1605, 72
        %v1809 = vpop.permute.xlu0 %1808
        %v1813 = vsel %vm663, %v1789, 0
        %1815 = vmatprep.subr.mxu0 0.0
        %1816 = vmatpush1.msra.mxu0 %v1807
        %1817 = vmatprep.subr.mxu0 0.0
        %1818 = vmatpush1.msra.mxu0 %v1809
        %1819 = vmatprep.subr.mxu0 0.0
        %1820 = vmatpush1.msra.mxu0 0.0
        %1821 = vmatprep.subr.mxu0 0.0
        %1822 = vmatpush1.msra.mxu0 0.0
        %1823 = vmatprep.subr.mxu0 0.0
        %1824 = vmatpush1.msra.mxu0 0.0
        %1825 = vmatprep.subr.mxu0 0.0
        %1826 = vmatpush1.msra.mxu0 0.0
        %1827 = vmatprep.subr.mxu0 0.0
        %1828 = vmatpush1.msra.mxu0 0.0
        %1829 = vmatprep.subr.mxu0 0.0
        %1830 = vmatpush1.msra.mxu0 0.0
        %1831 = vmatprep.subr.mxu0 0.0
        %1832 = vmatpush1.msra.mxu0 0.0
        %1833 = vmatprep.subr.mxu0 0.0
        %1834 = vmatpush1.msra.mxu0 0.0
        %1835 = vmatprep.subr.mxu0 0.0
        %1836 = vmatpush1.msra.mxu0 0.0
        %1837 = vmatprep.subr.mxu0 0.0
        %1838 = vmatpush1.msra.mxu0 0.0
        %1839 = vmatprep.subr.mxu0 0.0
        %1840 = vmatpush1.msra.mxu0 0.0
        %1841 = vmatprep.subr.mxu0 0.0
        %1842 = vmatpush1.msra.mxu0 0.0
        %1843 = vmatprep.subr.mxu0 0.0
        %1844 = vmatpush1.msra.mxu0 0.0
        %1845 = vmatprep.subr.mxu0 0.0
        %1846 = vmatpush1.msra.mxu0 0.0
        %1847 = vmatprep.subr.mxu0 0.0
        %1848 = vmatpush1.msra.mxu0 0.0
        %1849 = vmatprep.subr.mxu0 0.0
        %1850 = vmatpush1.msra.mxu0 0.0
        %1851 = vmatprep.subr.mxu0 0.0
        %1852 = vmatpush1.msra.mxu0 0.0
        %1853 = vmatprep.subr.mxu0 0.0
        %1854 = vmatpush1.msra.mxu0 0.0
        %1855 = vmatprep.subr.mxu0 0.0
        %1856 = vmatpush1.msra.mxu0 0.0
        %1857 = vmatprep.subr.mxu0 0.0
        %1858 = vmatpush1.msra.mxu0 0.0
        %1859 = vmatprep.subr.mxu0 0.0
        %1860 = vmatpush1.msra.mxu0 0.0
        %1861 = vmatprep.subr.mxu0 0.0
        %1862 = vmatpush1.msra.mxu0 0.0
        %1863 = vmatprep.subr.mxu0 0.0
        %1864 = vmatpush1.msra.mxu0 0.0
        %1865 = vmatprep.subr.mxu0 0.0
        %1866 = vmatpush1.msra.mxu0 0.0
        %1867 = vmatprep.subr.mxu0 0.0
        %1868 = vmatpush1.msra.mxu0 0.0
        %1869 = vmatprep.subr.mxu0 0.0
        %1870 = vmatpush1.msra.mxu0 0.0
        %1871 = vmatprep.subr.mxu0 0.0
        %1872 = vmatpush1.msra.mxu0 0.0
        %1873 = vmatprep.subr.mxu0 0.0
        %1874 = vmatpush1.msra.mxu0 0.0
        %1875 = vmatprep.subr.mxu0 0.0
        %1876 = vmatpush1.msra.mxu0 0.0
        %1877 = vmatprep.subr.mxu0 0.0
        %1878 = vmatpush1.msra.mxu0 0.0
        %1879 = vmatprep.mubr.f32.mxu0 0.0
        %1880 = vmatmul.mubr.f32.gmra.mrb[0].mxu0 %v1813
        %v1881 = vpop.f32.mrb[0].mxu0
        %v1882 = vadd.f32 0.0, %v1881
        %v1883 = vpop.f32.mrb[0].mxu0
        %1884 = vdwg.mxu0
        %1885 = vrot.lane.b32.xlu0 %v1606, 72
        %v1886 = vpop.permute.xlu0 %1885
        %1887 = vrot.lane.b32.xlu0 %v1607, 72
        %v1888 = vpop.permute.xlu0 %1887
        %v1892 = vsel %vm663, %v1791, 0
        %1894 = vmatprep.subr.mxu0 0.0
        %1895 = vmatpush1.msra.mxu0 %v1886
        %1896 = vmatprep.subr.mxu0 0.0
        %1897 = vmatpush1.msra.mxu0 %v1888
        %1898 = vmatprep.subr.mxu0 0.0
        %1899 = vmatpush1.msra.mxu0 0.0
        %1900 = vmatprep.subr.mxu0 0.0
        %1901 = vmatpush1.msra.mxu0 0.0
        %1902 = vmatprep.subr.mxu0 0.0
        %1903 = vmatpush1.msra.mxu0 0.0
        %1904 = vmatprep.subr.mxu0 0.0
        %1905 = vmatpush1.msra.mxu0 0.0
        %1906 = vmatprep.subr.mxu0 0.0
        %1907 = vmatpush1.msra.mxu0 0.0
        %1908 = vmatprep.subr.mxu0 0.0
        %1909 = vmatpush1.msra.mxu0 0.0
        %1910 = vmatprep.subr.mxu0 0.0
        %1911 = vmatpush1.msra.mxu0 0.0
        %1912 = vmatprep.subr.mxu0 0.0
        %1913 = vmatpush1.msra.mxu0 0.0
        %1914 = vmatprep.subr.mxu0 0.0
        %1915 = vmatpush1.msra.mxu0 0.0
        %1916 = vmatprep.subr.mxu0 0.0
        %1917 = vmatpush1.msra.mxu0 0.0
        %1918 = vmatprep.subr.mxu0 0.0
        %1919 = vmatpush1.msra.mxu0 0.0
        %1920 = vmatprep.subr.mxu0 0.0
        %1921 = vmatpush1.msra.mxu0 0.0
        %1922 = vmatprep.subr.mxu0 0.0
        %1923 = vmatpush1.msra.mxu0 0.0
        %1924 = vmatprep.subr.mxu0 0.0
        %1925 = vmatpush1.msra.mxu0 0.0
        %1926 = vmatprep.subr.mxu0 0.0
        %1927 = vmatpush1.msra.mxu0 0.0
        %1928 = vmatprep.subr.mxu0 0.0
        %1929 = vmatpush1.msra.mxu0 0.0
        %1930 = vmatprep.subr.mxu0 0.0
        %1931 = vmatpush1.msra.mxu0 0.0
        %1932 = vmatprep.subr.mxu0 0.0
        %1933 = vmatpush1.msra.mxu0 0.0
        %1934 = vmatprep.subr.mxu0 0.0
        %1935 = vmatpush1.msra.mxu0 0.0
        %1936 = vmatprep.subr.mxu0 0.0
        %1937 = vmatpush1.msra.mxu0 0.0
        %1938 = vmatprep.subr.mxu0 0.0
        %1939 = vmatpush1.msra.mxu0 0.0
        %1940 = vmatprep.subr.mxu0 0.0
        %1941 = vmatpush1.msra.mxu0 0.0
        %1942 = vmatprep.subr.mxu0 0.0
        %1943 = vmatpush1.msra.mxu0 0.0
        %1944 = vmatprep.subr.mxu0 0.0
        %1945 = vmatpush1.msra.mxu0 0.0
        %1946 = vmatprep.subr.mxu0 0.0
        %1947 = vmatpush1.msra.mxu0 0.0
        %1948 = vmatprep.subr.mxu0 0.0
        %1949 = vmatpush1.msra.mxu0 0.0
        %1950 = vmatprep.subr.mxu0 0.0
        %1951 = vmatpush1.msra.mxu0 0.0
        %1952 = vmatprep.subr.mxu0 0.0
        %1953 = vmatpush1.msra.mxu0 0.0
        %1954 = vmatprep.subr.mxu0 0.0
        %1955 = vmatpush1.msra.mxu0 0.0
        %1956 = vmatprep.subr.mxu0 0.0
        %1957 = vmatpush1.msra.mxu0 0.0
        %1958 = vmatprep.mubr.f32.mxu0 0.0
        %1959 = vmatmul.mubr.f32.gmra.mrb[0].mxu0 %v1892
        %v1960 = vpop.f32.mrb[0].mxu0
        %v1961 = vadd.f32 0.0, %v1960
        %v1962 = vpop.f32.mrb[0].mxu0
        %1963 = vdwg.mxu0
        %v1964 = vmul.f32 %v1882, %v1804
        %v1965 = vmul.f32 %v1961, %v1805
        %1968 = vrot.lane.b32.xlu0 %v1964, 24
        %v1969 = vpop.permute.xlu0 %1968
        %1970 = vrot.lane.b32.xlu0 %v1965, 24
        %v1971 = vpop.permute.xlu0 %1970
        %vm1974 = vcmask 261312
        %1975 = vst.msk [vmem:[#allocation4] sm:$0xff] %vm1974, %v1969
        %1976 = vst.msk [vmem:[#allocation4 + $0x8] sm:$0xff] %vm1974, %v1971
        %v1977 = vld [vmem:[#allocation4] sm:$0xff]
        %v1978 = vld [vmem:[#allocation4 + $0x8] sm:$0xff]
        %v1979 = vld [vmem:[#allocation5] sm:$0xff]
        %v1980 = vld [vmem:[#allocation5 + $0x8] sm:$0xff]
        %v1981 = vld [vmem:[#allocation5 + $0x10] sm:$0xff]
        %v1982 = vld [vmem:[#allocation5 + $0x18] sm:$0xff]
        %v1983 = vld [vmem:[%s5] sm:$0x1]
        %v1985 = vlaneseq
        %v1986 = vshrl.u32 %v1985, 7
        %v1987 = vsub.s32 0, %v1986
        %v1988 = vrot.slane %v1983, %v1987
        %v1991 = vsel %vm296, %v1977, 0
        %v1994 = vsel %vm296, %v1978, 0
        %1996 = vmatprep.subr.mxu0 0.0
        %1997 = vmatpush1.msra.mxu0 %v1979
        %1998 = vmatprep.subr.mxu0 0.0
        %1999 = vmatpush1.msra.mxu0 %v1980
        %2000 = vmatprep.subr.mxu0 0.0
        %2001 = vmatpush1.msra.mxu0 %v1981
        %2002 = vmatprep.subr.mxu0 0.0
        %2003 = vmatpush1.msra.mxu0 %v1982
        %2004 = vmatprep.subr.mxu0 0.0
        %2005 = vmatpush1.msra.mxu0 0.0
        %2006 = vmatprep.subr.mxu0 0.0
        %2007 = vmatpush1.msra.mxu0 0.0
        %2008 = vmatprep.subr.mxu0 0.0
        %2009 = vmatpush1.msra.mxu0 0.0
        %2010 = vmatprep.subr.mxu0 0.0
        %2011 = vmatpush1.msra.mxu0 0.0
        %2012 = vmatprep.subr.mxu0 0.0
        %2013 = vmatpush1.msra.mxu0 0.0
        %2014 = vmatprep.subr.mxu0 0.0
        %2015 = vmatpush1.msra.mxu0 0.0
        %2016 = vmatprep.subr.mxu0 0.0
        %2017 = vmatpush1.msra.mxu0 0.0
        %2018 = vmatprep.subr.mxu0 0.0
        %2019 = vmatpush1.msra.mxu0 0.0
        %2020 = vmatprep.subr.mxu0 0.0
        %2021 = vmatpush1.msra.mxu0 0.0
        %2022 = vmatprep.subr.mxu0 0.0
        %2023 = vmatpush1.msra.mxu0 0.0
        %2024 = vmatprep.subr.mxu0 0.0
        %2025 = vmatpush1.msra.mxu0 0.0
        %2026 = vmatprep.subr.mxu0 0.0
        %2027 = vmatpush1.msra.mxu0 0.0
        %2028 = vmatprep.subr.mxu0 0.0
        %2029 = vmatpush1.msra.mxu0 0.0
        %2030 = vmatprep.subr.mxu0 0.0
        %2031 = vmatpush1.msra.mxu0 0.0
        %2032 = vmatprep.subr.mxu0 0.0
        %2033 = vmatpush1.msra.mxu0 0.0
        %2034 = vmatprep.subr.mxu0 0.0
        %2035 = vmatpush1.msra.mxu0 0.0
        %2036 = vmatprep.subr.mxu0 0.0
        %2037 = vmatpush1.msra.mxu0 0.0
        %2038 = vmatprep.subr.mxu0 0.0
        %2039 = vmatpush1.msra.mxu0 0.0
        %2040 = vmatprep.subr.mxu0 0.0
        %2041 = vmatpush1.msra.mxu0 0.0
        %2042 = vmatprep.subr.mxu0 0.0
        %2043 = vmatpush1.msra.mxu0 0.0
        %2044 = vmatprep.subr.mxu0 0.0
        %2045 = vmatpush1.msra.mxu0 0.0
        %2046 = vmatprep.subr.mxu0 0.0
        %2047 = vmatpush1.msra.mxu0 0.0
        %2048 = vmatprep.subr.mxu0 0.0
        %2049 = vmatpush1.msra.mxu0 0.0
        %2050 = vmatprep.subr.mxu0 0.0
        %2051 = vmatpush1.msra.mxu0 0.0
        %2052 = vmatprep.subr.mxu0 0.0
        %2053 = vmatpush1.msra.mxu0 0.0
        %2054 = vmatprep.subr.mxu0 0.0
        %2055 = vmatpush1.msra.mxu0 0.0
        %2056 = vmatprep.subr.mxu0 0.0
        %2057 = vmatpush1.msra.mxu0 0.0
        %2058 = vmatprep.subr.mxu0 0.0
        %2059 = vmatpush1.msra.mxu0 0.0
        %2060 = vmatprep.mubr.f32.mxu0 0.0
        %2061 = vmatmul.mubr.f32.gmra.mrb[0].mxu0 %v1991
        %v2062 = vpop.f32.mrb[0].mxu0
        %v2063 = vadd.f32 %v1988, %v2062
        %v2064 = vpop.f32.mrb[0].mxu0
        %2065 = vmatprep.mubr.f32.mxu0 0.0
        %2066 = vmatmul.mubr.f32.gmra.mrb[0].mxu0 %v1994
        %v2067 = vpop.f32.mrb[0].mxu0
        %v2068 = vadd.f32 %v1988, %v2067
        %v2069 = vpop.f32.mrb[0].mxu0
        %2070 = vdwg.mxu0
        %2071 = vst.msk [vmem:[%s276] sm:$0xff] %vm296, %v2063
        %2072 = vst.msk [vmem:[%s276 + $0x8] sm:$0xff] %vm296, %v2068
        %s2073 = sand.u32 %s165, 1
        %s2074 = scalar_lea.sflag [#allocation7], %s2073
        %s2075 = sand.u32 %s165, 1
        %s2076 = smul.addr %s2075, 16
        %s2077 = scalar_lea.vmem [#allocation8], %s2076
        // Predicated region
        $region49: #{tpu_custom_call.1} parent=43 // pred_check
          %p2078 = pneg %p175
        $region50: #{tpu_custom_call.1} parent=43 // pred_check_branch
          %2080 = sbr.rel (%p2078) target = $region52
        $region51: #{tpu_custom_call.1} parent=43 // pred_region
          %s2081 = smul.u32 2, %s21
          %s2083 = ssub.s32 256, 256
          %2084 = vsyncadd %s2074, %s2083
          %s2085 = smul.addr %s2081, 128
          %s2086 = scalar_lea.hbm %s6, %s2085
          %s2087 = sshll.u32 %s2077, 4
          %s2088 = int_to_ptr.vmem [resolvable:$true] %s2087
          %2093 = dma.vmem_to_hbm [thread:$0]  %s2088, 256, %s2086, %s2074, 128, 128, 8
        $region52: #{tpu_custom_call.1} parent=43 // pred_fallthru
          _
      $region44: #{tpu_custom_call.1} parent=5 // pred_fallthru
        _
      %p2094 = scmp.le.s32.totalorder 2, %s16
      // Predicated region
      $region53: #{tpu_custom_call.1} parent=5 // pred_check
        %p2095 = pneg %p2094
      $region54: #{tpu_custom_call.1} parent=5 // pred_check_branch
        %2097 = sbr.rel (%p2095) target = $region56
      $region55: #{tpu_custom_call.1} parent=5 // pred_region
        %s2098 = ssub.s32 %s16, 2
        // Predicated region
        $region57: #{tpu_custom_call.1} parent=55 // pred_check
          %p2099 = pneg %p181
        $region58: #{tpu_custom_call.1} parent=55 // pred_check_branch
          %2101 = sbr.rel (%p2099) target = $region60
        $region59: #{tpu_custom_call.1} parent=55 // pred_region
          %s2102 = sand.u32 %s166, 1
          %s2103 = scalar_lea.sflag [#allocation7], %s2102
          %s2104 = sand.u32 %s166, 1
          %s2105 = smul.addr %s2104, 16
          %s2106 = scalar_lea.vmem [#allocation8], %s2105
          %2107 = dma.done %s2103, 256
        $region60: #{tpu_custom_call.1} parent=55 // pred_fallthru
          _
      $region56: #{tpu_custom_call.1} parent=5 // pred_fallthru
        _
    $region6: #{tpu_custom_call.1} parent=1 // loop_footer
      %s20 = sadd.s32 1, %s16
    $region7: #{tpu_custom_call.1} parent=1 // loop_footer_branch
      %15 = sbr.rel target = $region3
    $region8: #{tpu_custom_call.1} parent=1 // loop_exit
      _
    %2108 = vsyncpa [#allocation6], 1
    %s2109 = scalar_lea.sflag [#allocation6], 1
    %2110 = vsyncpa %s2109, 1
    %2111 = vsyncpa [#allocation7], 1
    %s2112 = scalar_lea.sflag [#allocation7], 1
    %2113 = vsyncpa %s2112, 1

</llo_original>
